<compile_context>
chip_gen: v6e
topology: v6e:2x2x1
jax: 0.10.0
libtpu: 0.0.40
codegen_flags: <defaults>
</compile_context>

<pallas_src>
import numpy as np
import jax
import jax.numpy as jnp
from jax import lax
from jax.experimental import pallas as pl
from jax.experimental.pallas import tpu as pltpu


_NEG_SLOPE = 0.2  # LeakyReLU slope used by every conv layer and the head


def _leaky(v):
    # slope < 1  =>  LeakyReLU(x) == max(x, slope*x)   (one VPU op, review item 8)
    return jnp.maximum(v, _NEG_SLOPE * v)


def _pick_vmem_limit():
    """Per-generation VMEM cap (review item 6): capacity minus headroom, clamped."""
    cap = 64 * 1024 * 1024
    try:
        info = pltpu.get_tpu_info()
        cap = int(getattr(info, "vmem_capacity_bytes", cap))
    except Exception:
        pass
    return int(max(32 * 1024 * 1024, min(cap - 16 * 1024 * 1024, 112 * 1024 * 1024)))


# ----------------------------------------------------------------------------
# Fused whole-network kernel (one grid step = TB samples)
# ----------------------------------------------------------------------------
def _make_disc_kernel(cfg, frame, tb):
    """cfg: static tuple of (C_in, C_out, stride, P_in, Q_out) per conv layer.

    Activation layout inside the kernel: a Python list of `P` phase values, each of shape
    (C, W) with W = tb*(frame+2); sample b occupies lanes [b*(frame+2), (b+1)*(frame+2)),
    lane offsets 0 and frame+1 of each sample block are zero halos (== the conv's pad=1).
    """
    n_layers = len(cfg)
    W = tb * (frame + 2)

    def kernel(*refs):
        x_ref = refs[0]
        conv_refs = refs[1:1 + 2 * n_layers]
        hw1_ref, hb1_ref, hw2_ref, hb2_ref, pool_ref = refs[1 + 2 * n_layers:6 + 2 * n_layers]
        out_ref = refs[6 + 2 * n_layers]

        # Lane mask selecting the per-sample interior (non-halo) positions.  Computed once;
        # re-zeroing the halos is a fused select, not a buffer-zero pass (review item 2).
        lane = lax.broadcasted_iota(jnp.int32, (1, W), 1)
        pos = lane % (frame + 2)
        interior = jnp.logical_and(pos >= 1, pos <= frame)

        # Split the pre-laid-out input block into its P0 phase row-blocks.
        C0, _, _, P0, _ = cfg[0]
        x_all = x_ref[0]                                          # (P0*C0, W) f32
        phases = [x_all[p * C0:(p + 1) * C0, :] for p in range(P0)]

        for li, (C_in, C_out, s, P, Q) in enumerate(cfg):
            wv = conv_refs[2 * li][...]                           # (C_out, 3*C_in)
            bv = conv_refs[2 * li + 1][...]                       # (C_out, 1) f32
            new_phases = []
            for q in range(Q):
                blocks = []
                acc = None
                for t in range(3):
                    r = q * s + t - 1                             # input phase index of this tap
                    if r < 0:
                        # needs x[.-1]: previous frame position of the last phase
                        blk = pltpu.roll(phases[P - 1], shift=1, axis=1)
                    elif r >= P:
                        # needs x[.+1]: next frame position of phase 0 (stride-1 layers only)
                        blk = pltpu.roll(phases[0], shift=W - 1, axis=1)
                    else:
                        blk = phases[r]
                    if C_in == 1:
                        # Degenerate K: a VPU broadcast FMA beats a 1-deep MXU contraction.
                        contrib = wv[:, t * C_in:(t + 1) * C_in] * blk     # (C_out, W)
                        acc = contrib if acc is None else acc + contrib
                    else:
                        blocks.append(blk)
                if C_in > 1:
                    # Folded taps: one bf16 MXU dot, K = 3*C_in, N = W, f32 accumulation.
                    slab = jnp.concatenate(blocks, axis=0).astype(jnp.bfloat16)
                    acc = jnp.dot(wv, slab, preferred_element_type=jnp.float32)
                y = _leaky(acc + bv)                              # lane-dense f32 epilogue
                new_phases.append(jnp.where(interior, y, 0.0))    # keep halos exactly zero
            phases = new_phases

        # Head: AdaptiveAvgPool1d(1) -> Conv1d(C,2C,1) -> LeakyReLU(0.2) -> Conv1d(2C,1,1).
        act = phases[0]                                           # last layer has Q == 1
        # Per-sample mean over the frame lanes via a tiny constant pooling matmul.
        pooled = jnp.dot(act, pool_ref[...], preferred_element_type=jnp.float32)   # (C_last, tb)
        h = _leaky(jnp.dot(hw1_ref[...], pooled, preferred_element_type=jnp.float32) + hb1_ref[...])
        out_ref[0] = jnp.dot(hw2_ref[...], h, preferred_element_type=jnp.float32) + hb2_ref[...]

    return kernel


# ----------------------------------------------------------------------------
# Wrapper: polyphase layout + parameter repacking + pallas_call plumbing
# ----------------------------------------------------------------------------
def discriminator_forward(params, x_ncl, *, tb=2):
    """Forward pass matching Discriminator.forward.  x_ncl: (B, C_in, L) PyTorch NCL."""
    B, C0, L0 = x_ncl.shape
    n_blocks = len(params["block3"])
    s_total = 2 ** (n_blocks + 1)                  # product of all conv strides
    assert L0 % s_total == 0, (
        f"sequence length {L0} must be divisible by the total stride {s_total}")
    frame = L0 // s_total
    W = tb * (frame + 2)

    # ---- conv layers (block1, block2, block3 stages), polyphase bookkeeping ----
    conv_layers = [(params["block1"], 1), (params["block2"], 2)]
    for wb_s1, wb_s2 in params["block3"]:
        conv_layers += [(wb_s1, 1), (wb_s2, 2)]

    cfg = []
    weight_inputs = []
    P = s_total
    for (w, b), s in conv_layers:
        C_out, C_in, K = w.shape                   # PyTorch (C_out, C_in, 3)
        assert K == 3
        Q = P // s
        cfg.append((C_in, C_out, s, P, Q))
        # Packed weight (C_out, 3*C_in), K index = tap*C_in + c  (matches in-kernel slab).
        wp = jnp.transpose(w, (0, 2, 1)).reshape(C_out, 3 * C_in)
        weight_inputs.append(wp.astype(jnp.float32 if C_in == 1 else jnp.bfloat16))
        weight_inputs.append(b.reshape(C_out, 1).astype(jnp.float32))
        P = Q
    assert P == 1

    w1, b1, w2, b2 = params["block4"]
    C_mid = w1.shape[0]
    head_inputs = [
        w1[:, :, 0].astype(jnp.float32),           # (2C, C)
        b1.reshape(C_mid, 1).astype(jnp.float32),
        w2[:, :, 0].astype(jnp.float32),           # (1, 2C)
        b2.reshape(1, 1).astype(jnp.float32),
    ]

    # ---- batch blocking + polyphase (space-to-depth) input layout ----
    G = -(-B // tb)
    Bp = G * tb
    x = x_ncl.astype(jnp.float32)
    if Bp != B:
        x = jnp.concatenate([x, jnp.zeros((Bp - B, C0, L0), jnp.float32)], axis=0)
    xr = x.reshape(Bp, C0, frame, s_total)                       # [b, c, m, p]
    xr = jnp.transpose(xr, (0, 3, 1, 2)).reshape(Bp, s_total * C0, frame)   # rows = p*C0 + c
    xr = jnp.pad(xr, ((0, 0), (0, 0), (1, 1)))                   # zero halo lanes per sample
    xr = xr.reshape(G, tb, s_total * C0, frame + 2)
    x_in = jnp.transpose(xr, (0, 2, 1, 3)).reshape(G, s_total * C0, W)

    # Constant pooling matrix: per-sample mean over interior lanes (AdaptiveAvgPool1d(1)).
    pool_np = np.zeros((W, tb), np.float32)
    for bb in range(tb):
        pool_np[bb * (frame + 2) + 1: bb * (frame + 2) + 1 + frame, bb] = 1.0 / frame
    pool_mat = jnp.asarray(pool_np)

    flat_inputs = [x_in] + weight_inputs + head_inputs + [pool_mat]

    def _bcast_spec(arr):
        nd = arr.ndim
        return pl.BlockSpec(arr.shape, lambda g, _nd=nd: (0,) * _nd)

    in_specs = [pl.BlockSpec((1, s_total * C0, W), lambda g: (g, 0, 0))]
    in_specs += [_bcast_spec(a) for a in flat_inputs[1:]]

    out = pl.pallas_call(
        _make_disc_kernel(tuple(cfg), frame, tb),
        grid=(G,),
        in_specs=in_specs,
        out_specs=pl.BlockSpec((1, 1, tb), lambda g: (g, 0, 0)),
        out_shape=jax.ShapeDtypeStruct((G, 1, tb), jnp.float32),
        compiler_params=pltpu.CompilerParams(
            dimension_semantics=("parallel",),      # batch-step axis shards across v7x's 2 TCs
            vmem_limit_bytes=_pick_vmem_limit(),
        ),
    )(*flat_inputs)

    # F.leaky_relu(y, negative_slope=1) is the identity -> dropped.
    return out.reshape(Bp)[:B]


# ----------------------------------------------------------------------------
# Parameter construction (deterministic, PyTorch-default-style uniform init)
# ----------------------------------------------------------------------------
def init_params(key, disc_blocks, in_channels, m):
    def conv_init(k, c_out, c_in, ksize):
        k1, k2 = jax.random.split(k)
        bound = 1.0 / float(c_in * ksize) ** 0.5
        w = jax.random.uniform(k1, (c_out, c_in, ksize), jnp.float32, -bound, bound)
        b = jax.random.uniform(k2, (c_out,), jnp.float32, -bound, bound)
        return w, b

    keys = iter(jax.random.split(key, 4 + 2 * disc_blocks))
    params = {}
    params["block1"] = conv_init(next(keys), m, in_channels, 3)
    params["block2"] = conv_init(next(keys), m, m, 3)
    b3 = []
    for i in range(disc_blocks):
        prev, nxt = m * (1 << i), m * (1 << (i + 1))
        b3.append((conv_init(next(keys), nxt, prev, 3),
                   conv_init(next(keys), nxt, nxt, 3)))
    params["block3"] = b3
    c = m * (1 << disc_blocks)
    w1, b1 = conv_init(next(keys), 2 * c, c, 1)
    w2, b2 = conv_init(next(keys), 1, 2 * c, 1)
    params["block4"] = (w1, b1, w2, b2)
    return params


# ----------------------------------------------------------------------------
# Pure-JAX f32 reference (correctness check)
# ----------------------------------------------------------------------------
def _ref_conv1d(x, w, b, stride, pad):
    out = jax.lax.conv_general_dilated(
        x, w, window_strides=(stride,), padding=((pad, pad),),
        dimension_numbers=("NCH", "OIH", "NCH"))
    return out + b[None, :, None]


def ref_forward(params, x):
    lrelu = lambda v: jnp.where(v >= 0, v, 0.2 * v)
    x = lrelu(_ref_conv1d(x, *params["block1"], 1, 1))
    x = lrelu(_ref_conv1d(x, *params["block2"], 2, 1))
    for (wa, ba), (wb, bb) in params["block3"]:
        x = lrelu(_ref_conv1d(x, wa, ba, 1, 1))
        x = lrelu(_ref_conv1d(x, wb, bb, 2, 1))
    w1, b1, w2, b2 = params["block4"]
    x = jnp.mean(x, axis=2, keepdims=True)                      # AdaptiveAvgPool1d(1)
    x = lrelu(_ref_conv1d(x, w1, b1, 1, 0))
    x = _ref_conv1d(x, w2, b2, 1, 0)
    return x.reshape(x.shape[0])


# ----------------------------------------------------------------------------
if __name__ == "__main__":
    key = jax.random.PRNGKey(0)
    kp, kx = jax.random.split(key)

    B, C_in, L = 4, 1, 128         # NCL input; L divisible by total stride 2**(DiscBlocks+1)=8
    disc_blocks, m = 2, 8          # Discriminator(DiscBlocks=2, in_channels=1, inital_filter_size=8)

    params = init_params(kp, disc_blocks, C_in, m)
    x = jax.random.normal(kx, (B, C_in, L), jnp.float32)

    out = jax.block_until_ready(discriminator_forward(params, x, tb=2))
    ref = jax.block_until_ready(ref_forward(params, x))

    assert out.shape == (B,)
    # bf16 MXU operands with f32 accumulation -> tolerance relaxed vs the f32 reference.
    np.testing.assert_allclose(np.asarray(out), np.asarray(ref), rtol=3e-2, atol=3e-2)

    print("KERNEL_OK")
</pallas_src>

<mosaic_0001>
module attributes {stable_mosaic.version = 11 : i64} {
  func.func @kernel(%arg0: i32, %arg1: memref<1x8x36xf32, #tpu.memory_space<vmem>>, %arg2: memref<8x3xf32, #tpu.memory_space<vmem>>, %arg3: memref<8x1xf32, #tpu.memory_space<vmem>>, %arg4: memref<8x24xbf16, #tpu.memory_space<vmem>>, %arg5: memref<8x1xf32, #tpu.memory_space<vmem>>, %arg6: memref<16x24xbf16, #tpu.memory_space<vmem>>, %arg7: memref<16x1xf32, #tpu.memory_space<vmem>>, %arg8: memref<16x48xbf16, #tpu.memory_space<vmem>>, %arg9: memref<16x1xf32, #tpu.memory_space<vmem>>, %arg10: memref<32x48xbf16, #tpu.memory_space<vmem>>, %arg11: memref<32x1xf32, #tpu.memory_space<vmem>>, %arg12: memref<32x96xbf16, #tpu.memory_space<vmem>>, %arg13: memref<32x1xf32, #tpu.memory_space<vmem>>, %arg14: memref<64x32xf32, #tpu.memory_space<vmem>>, %arg15: memref<64x1xf32, #tpu.memory_space<vmem>>, %arg16: memref<1x64xf32, #tpu.memory_space<vmem>>, %arg17: memref<1x1xf32, #tpu.memory_space<vmem>>, %arg18: memref<36x2xf32, #tpu.memory_space<vmem>>, %arg19: memref<1x1x2xf32, #tpu.memory_space<vmem>>) attributes {dimension_semantics = [#tpu.dimension_semantics<parallel>], iteration_bounds = array<i64: 2>, scalar_prefetch = 0 : i64, scratch_operands = 0 : i64, tpu.core_type = #tpu.core_type<tc>, window_params = [{transform_indices = @transform_0, window_bounds = array<i64: 1, 8, 36>}, {pipeline_mode = #tpu.pipeline_mode<synchronous>, transform_indices = @transform_1, window_bounds = array<i64: 8, 3>}, {pipeline_mode = #tpu.pipeline_mode<synchronous>, transform_indices = @transform_2, window_bounds = array<i64: 8, 1>}, {pipeline_mode = #tpu.pipeline_mode<synchronous>, transform_indices = @transform_3, window_bounds = array<i64: 8, 24>}, {pipeline_mode = #tpu.pipeline_mode<synchronous>, transform_indices = @transform_4, window_bounds = array<i64: 8, 1>}, {pipeline_mode = #tpu.pipeline_mode<synchronous>, transform_indices = @transform_5, window_bounds = array<i64: 16, 24>}, {pipeline_mode = #tpu.pipeline_mode<synchronous>, transform_indices = @transform_6, window_bounds = array<i64: 16, 1>}, {pipeline_mode = #tpu.pipeline_mode<synchronous>, transform_indices = @transform_7, window_bounds = array<i64: 16, 48>}, {pipeline_mode = #tpu.pipeline_mode<synchronous>, transform_indices = @transform_8, window_bounds = array<i64: 16, 1>}, {pipeline_mode = #tpu.pipeline_mode<synchronous>, transform_indices = @transform_9, window_bounds = array<i64: 32, 48>}, {pipeline_mode = #tpu.pipeline_mode<synchronous>, transform_indices = @transform_10, window_bounds = array<i64: 32, 1>}, {pipeline_mode = #tpu.pipeline_mode<synchronous>, transform_indices = @transform_11, window_bounds = array<i64: 32, 96>}, {pipeline_mode = #tpu.pipeline_mode<synchronous>, transform_indices = @transform_12, window_bounds = array<i64: 32, 1>}, {pipeline_mode = #tpu.pipeline_mode<synchronous>, transform_indices = @transform_13, window_bounds = array<i64: 64, 32>}, {pipeline_mode = #tpu.pipeline_mode<synchronous>, transform_indices = @transform_14, window_bounds = array<i64: 64, 1>}, {pipeline_mode = #tpu.pipeline_mode<synchronous>, transform_indices = @transform_15, window_bounds = array<i64: 1, 64>}, {pipeline_mode = #tpu.pipeline_mode<synchronous>, transform_indices = @transform_16, window_bounds = array<i64: 1, 1>}, {pipeline_mode = #tpu.pipeline_mode<synchronous>, transform_indices = @transform_17, window_bounds = array<i64: 36, 2>}, {transform_indices = @transform_18, window_bounds = array<i64: 1, 1, 2>}]} {
    %0 = tpu.iota {dimensions = array<i32: 1>} : vector<1x36xi32>
    %c18_i32 = arith.constant 18 : i32
    %c0_i32 = arith.constant 0 : i32
    %1 = arith.cmpi eq, %c18_i32, %c0_i32 : i32
    %c1_i32 = arith.constant 1 : i32
    %2 = arith.select %1, %c1_i32, %c18_i32 : i32
    %3 = vector.broadcast %2 : i32 to vector<1x36xi32>
    %4 = arith.remsi %0, %3 : vector<1x36xi32>
    %c0_i32_0 = arith.constant 0 : i32
    %5 = vector.broadcast %c0_i32_0 : i32 to vector<1x36xi32>
    %6 = arith.cmpi ne, %4, %5 : vector<1x36xi32>
    %c0_i32_1 = arith.constant 0 : i32
    %7 = vector.broadcast %c0_i32_1 : i32 to vector<1x36xi32>
    %8 = arith.cmpi slt, %4, %7 : vector<1x36xi32>
    %c0_i32_2 = arith.constant 0 : i32
    %9 = arith.cmpi slt, %2, %c0_i32_2 : i32
    %10 = vector.broadcast %9 : i1 to vector<1x36xi1>
    %11 = vector.broadcast %10 : vector<1x36xi1> to vector<1x36xi1>
    %12 = arith.xori %8, %11 : vector<1x36xi1>
    %13 = arith.andi %12, %6 : vector<1x36xi1>
    %14 = vector.broadcast %2 : i32 to vector<1x36xi32>
    %15 = arith.addi %4, %14 : vector<1x36xi32>
    %16 = arith.select %13, %15, %4 : vector<1x36xi1>, vector<1x36xi32>
    %c1_i32_3 = arith.constant 1 : i32
    %17 = vector.broadcast %c1_i32_3 : i32 to vector<1x36xi32>
    %18 = arith.cmpi sge, %16, %17 : vector<1x36xi32>
    %c16_i32 = arith.constant 16 : i32
    %19 = vector.broadcast %c16_i32 : i32 to vector<1x36xi32>
    %20 = arith.cmpi sle, %16, %19 : vector<1x36xi32>
    %21 = arith.andi %18, %20 : vector<1x36xi1>
    %c0 = arith.constant 0 : index
    %c0_4 = arith.constant 0 : index
    %c0_5 = arith.constant 0 : index
    %22 = vector.load %arg1[%c0, %c0_4, %c0_5] : memref<1x8x36xf32, #tpu.memory_space<vmem>>, vector<1x8x36xf32>
    %23 = vector.shape_cast %22 : vector<1x8x36xf32> to vector<8x36xf32>
    %24 = vector.extract_strided_slice %23 {offsets = [0, 0], sizes = [1, 36], strides = [1, 1]} : vector<8x36xf32> to vector<1x36xf32>
    %25 = vector.extract_strided_slice %23 {offsets = [1, 0], sizes = [1, 36], strides = [1, 1]} : vector<8x36xf32> to vector<1x36xf32>
    %26 = vector.extract_strided_slice %23 {offsets = [2, 0], sizes = [1, 36], strides = [1, 1]} : vector<8x36xf32> to vector<1x36xf32>
    %27 = vector.extract_strided_slice %23 {offsets = [3, 0], sizes = [1, 36], strides = [1, 1]} : vector<8x36xf32> to vector<1x36xf32>
    %28 = vector.extract_strided_slice %23 {offsets = [4, 0], sizes = [1, 36], strides = [1, 1]} : vector<8x36xf32> to vector<1x36xf32>
    %29 = vector.extract_strided_slice %23 {offsets = [5, 0], sizes = [1, 36], strides = [1, 1]} : vector<8x36xf32> to vector<1x36xf32>
    %30 = vector.extract_strided_slice %23 {offsets = [6, 0], sizes = [1, 36], strides = [1, 1]} : vector<8x36xf32> to vector<1x36xf32>
    %31 = vector.extract_strided_slice %23 {offsets = [7, 0], sizes = [1, 36], strides = [1, 1]} : vector<8x36xf32> to vector<1x36xf32>
    %c0_6 = arith.constant 0 : index
    %c0_7 = arith.constant 0 : index
    %32 = vector.load %arg2[%c0_6, %c0_7] : memref<8x3xf32, #tpu.memory_space<vmem>>, vector<8x3xf32>
    %c0_8 = arith.constant 0 : index
    %c0_9 = arith.constant 0 : index
    %33 = vector.load %arg3[%c0_8, %c0_9] : memref<8x1xf32, #tpu.memory_space<vmem>>, vector<8x1xf32>
    %c1_i32_10 = arith.constant 1 : i32
    %34 = tpu.dynamic_rotate %31 by %c1_i32_10 dim 1 : vector<1x36xf32>, i32 -> vector<1x36xf32>
    %35 = vector.extract_strided_slice %32 {offsets = [0, 0], sizes = [8, 1], strides = [1, 1]} : vector<8x3xf32> to vector<8x1xf32>
    %36 = vector.broadcast %35 : vector<8x1xf32> to vector<8x36xf32>
    %37 = vector.broadcast %34 : vector<1x36xf32> to vector<8x36xf32>
    %38 = arith.mulf %36, %37 : vector<8x36xf32>
    %39 = vector.extract_strided_slice %32 {offsets = [0, 1], sizes = [8, 1], strides = [1, 1]} : vector<8x3xf32> to vector<8x1xf32>
    %40 = vector.broadcast %39 : vector<8x1xf32> to vector<8x36xf32>
    %41 = vector.broadcast %24 : vector<1x36xf32> to vector<8x36xf32>
    %42 = arith.mulf %40, %41 : vector<8x36xf32>
    %43 = arith.addf %38, %42 : vector<8x36xf32>
    %44 = vector.extract_strided_slice %32 {offsets = [0, 2], sizes = [8, 1], strides = [1, 1]} : vector<8x3xf32> to vector<8x1xf32>
    %45 = vector.broadcast %44 : vector<8x1xf32> to vector<8x36xf32>
    %46 = vector.broadcast %25 : vector<1x36xf32> to vector<8x36xf32>
    %47 = arith.mulf %45, %46 : vector<8x36xf32>
    %48 = arith.addf %43, %47 : vector<8x36xf32>
    %49 = vector.broadcast %33 : vector<8x1xf32> to vector<8x36xf32>
    %50 = arith.addf %48, %49 : vector<8x36xf32>
    %cst = arith.constant 2.000000e-01 : f32
    %51 = vector.broadcast %cst : f32 to vector<8x36xf32>
    %52 = arith.mulf %51, %50 : vector<8x36xf32>
    %53 = arith.maximumf %50, %52 : vector<8x36xf32>
    %cst_11 = arith.constant 0.000000e+00 : f32
    %54 = vector.shape_cast %21 : vector<1x36xi1> to vector<1x36xi1>
    %55 = vector.broadcast %54 : vector<1x36xi1> to vector<8x36xi1>
    %56 = vector.broadcast %cst_11 : f32 to vector<8x36xf32>
    %57 = arith.select %55, %53, %56 : vector<8x36xi1>, vector<8x36xf32>
    %58 = vector.extract_strided_slice %32 {offsets = [0, 0], sizes = [8, 1], strides = [1, 1]} : vector<8x3xf32> to vector<8x1xf32>
    %59 = vector.broadcast %58 : vector<8x1xf32> to vector<8x36xf32>
    %60 = vector.broadcast %24 : vector<1x36xf32> to vector<8x36xf32>
    %61 = arith.mulf %59, %60 : vector<8x36xf32>
    %62 = vector.extract_strided_slice %32 {offsets = [0, 1], sizes = [8, 1], strides = [1, 1]} : vector<8x3xf32> to vector<8x1xf32>
    %63 = vector.broadcast %62 : vector<8x1xf32> to vector<8x36xf32>
    %64 = vector.broadcast %25 : vector<1x36xf32> to vector<8x36xf32>
    %65 = arith.mulf %63, %64 : vector<8x36xf32>
    %66 = arith.addf %61, %65 : vector<8x36xf32>
    %67 = vector.extract_strided_slice %32 {offsets = [0, 2], sizes = [8, 1], strides = [1, 1]} : vector<8x3xf32> to vector<8x1xf32>
    %68 = vector.broadcast %67 : vector<8x1xf32> to vector<8x36xf32>
    %69 = vector.broadcast %26 : vector<1x36xf32> to vector<8x36xf32>
    %70 = arith.mulf %68, %69 : vector<8x36xf32>
    %71 = arith.addf %66, %70 : vector<8x36xf32>
    %72 = vector.broadcast %33 : vector<8x1xf32> to vector<8x36xf32>
    %73 = arith.addf %71, %72 : vector<8x36xf32>
    %cst_12 = arith.constant 2.000000e-01 : f32
    %74 = vector.broadcast %cst_12 : f32 to vector<8x36xf32>
    %75 = arith.mulf %74, %73 : vector<8x36xf32>
    %76 = arith.maximumf %73, %75 : vector<8x36xf32>
    %cst_13 = arith.constant 0.000000e+00 : f32
    %77 = vector.shape_cast %21 : vector<1x36xi1> to vector<1x36xi1>
    %78 = vector.broadcast %77 : vector<1x36xi1> to vector<8x36xi1>
    %79 = vector.broadcast %cst_13 : f32 to vector<8x36xf32>
    %80 = arith.select %78, %76, %79 : vector<8x36xi1>, vector<8x36xf32>
    %81 = vector.extract_strided_slice %32 {offsets = [0, 0], sizes = [8, 1], strides = [1, 1]} : vector<8x3xf32> to vector<8x1xf32>
    %82 = vector.broadcast %81 : vector<8x1xf32> to vector<8x36xf32>
    %83 = vector.broadcast %25 : vector<1x36xf32> to vector<8x36xf32>
    %84 = arith.mulf %82, %83 : vector<8x36xf32>
    %85 = vector.extract_strided_slice %32 {offsets = [0, 1], sizes = [8, 1], strides = [1, 1]} : vector<8x3xf32> to vector<8x1xf32>
    %86 = vector.broadcast %85 : vector<8x1xf32> to vector<8x36xf32>
    %87 = vector.broadcast %26 : vector<1x36xf32> to vector<8x36xf32>
    %88 = arith.mulf %86, %87 : vector<8x36xf32>
    %89 = arith.addf %84, %88 : vector<8x36xf32>
    %90 = vector.extract_strided_slice %32 {offsets = [0, 2], sizes = [8, 1], strides = [1, 1]} : vector<8x3xf32> to vector<8x1xf32>
    %91 = vector.broadcast %90 : vector<8x1xf32> to vector<8x36xf32>
    %92 = vector.broadcast %27 : vector<1x36xf32> to vector<8x36xf32>
    %93 = arith.mulf %91, %92 : vector<8x36xf32>
    %94 = arith.addf %89, %93 : vector<8x36xf32>
    %95 = vector.broadcast %33 : vector<8x1xf32> to vector<8x36xf32>
    %96 = arith.addf %94, %95 : vector<8x36xf32>
    %cst_14 = arith.constant 2.000000e-01 : f32
    %97 = vector.broadcast %cst_14 : f32 to vector<8x36xf32>
    %98 = arith.mulf %97, %96 : vector<8x36xf32>
    %99 = arith.maximumf %96, %98 : vector<8x36xf32>
    %cst_15 = arith.constant 0.000000e+00 : f32
    %100 = vector.shape_cast %21 : vector<1x36xi1> to vector<1x36xi1>
    %101 = vector.broadcast %100 : vector<1x36xi1> to vector<8x36xi1>
    %102 = vector.broadcast %cst_15 : f32 to vector<8x36xf32>
    %103 = arith.select %101, %99, %102 : vector<8x36xi1>, vector<8x36xf32>
    %104 = vector.extract_strided_slice %32 {offsets = [0, 0], sizes = [8, 1], strides = [1, 1]} : vector<8x3xf32> to vector<8x1xf32>
    %105 = vector.broadcast %104 : vector<8x1xf32> to vector<8x36xf32>
    %106 = vector.broadcast %26 : vector<1x36xf32> to vector<8x36xf32>
    %107 = arith.mulf %105, %106 : vector<8x36xf32>
    %108 = vector.extract_strided_slice %32 {offsets = [0, 1], sizes = [8, 1], strides = [1, 1]} : vector<8x3xf32> to vector<8x1xf32>
    %109 = vector.broadcast %108 : vector<8x1xf32> to vector<8x36xf32>
    %110 = vector.broadcast %27 : vector<1x36xf32> to vector<8x36xf32>
    %111 = arith.mulf %109, %110 : vector<8x36xf32>
    %112 = arith.addf %107, %111 : vector<8x36xf32>
    %113 = vector.extract_strided_slice %32 {offsets = [0, 2], sizes = [8, 1], strides = [1, 1]} : vector<8x3xf32> to vector<8x1xf32>
    %114 = vector.broadcast %113 : vector<8x1xf32> to vector<8x36xf32>
    %115 = vector.broadcast %28 : vector<1x36xf32> to vector<8x36xf32>
    %116 = arith.mulf %114, %115 : vector<8x36xf32>
    %117 = arith.addf %112, %116 : vector<8x36xf32>
    %118 = vector.broadcast %33 : vector<8x1xf32> to vector<8x36xf32>
    %119 = arith.addf %117, %118 : vector<8x36xf32>
    %cst_16 = arith.constant 2.000000e-01 : f32
    %120 = vector.broadcast %cst_16 : f32 to vector<8x36xf32>
    %121 = arith.mulf %120, %119 : vector<8x36xf32>
    %122 = arith.maximumf %119, %121 : vector<8x36xf32>
    %cst_17 = arith.constant 0.000000e+00 : f32
    %123 = vector.shape_cast %21 : vector<1x36xi1> to vector<1x36xi1>
    %124 = vector.broadcast %123 : vector<1x36xi1> to vector<8x36xi1>
    %125 = vector.broadcast %cst_17 : f32 to vector<8x36xf32>
    %126 = arith.select %124, %122, %125 : vector<8x36xi1>, vector<8x36xf32>
    %127 = vector.extract_strided_slice %32 {offsets = [0, 0], sizes = [8, 1], strides = [1, 1]} : vector<8x3xf32> to vector<8x1xf32>
    %128 = vector.broadcast %127 : vector<8x1xf32> to vector<8x36xf32>
    %129 = vector.broadcast %27 : vector<1x36xf32> to vector<8x36xf32>
    %130 = arith.mulf %128, %129 : vector<8x36xf32>
    %131 = vector.extract_strided_slice %32 {offsets = [0, 1], sizes = [8, 1], strides = [1, 1]} : vector<8x3xf32> to vector<8x1xf32>
    %132 = vector.broadcast %131 : vector<8x1xf32> to vector<8x36xf32>
    %133 = vector.broadcast %28 : vector<1x36xf32> to vector<8x36xf32>
    %134 = arith.mulf %132, %133 : vector<8x36xf32>
    %135 = arith.addf %130, %134 : vector<8x36xf32>
    %136 = vector.extract_strided_slice %32 {offsets = [0, 2], sizes = [8, 1], strides = [1, 1]} : vector<8x3xf32> to vector<8x1xf32>
    %137 = vector.broadcast %136 : vector<8x1xf32> to vector<8x36xf32>
    %138 = vector.broadcast %29 : vector<1x36xf32> to vector<8x36xf32>
    %139 = arith.mulf %137, %138 : vector<8x36xf32>
    %140 = arith.addf %135, %139 : vector<8x36xf32>
    %141 = vector.broadcast %33 : vector<8x1xf32> to vector<8x36xf32>
    %142 = arith.addf %140, %141 : vector<8x36xf32>
    %cst_18 = arith.constant 2.000000e-01 : f32
    %143 = vector.broadcast %cst_18 : f32 to vector<8x36xf32>
    %144 = arith.mulf %143, %142 : vector<8x36xf32>
    %145 = arith.maximumf %142, %144 : vector<8x36xf32>
    %cst_19 = arith.constant 0.000000e+00 : f32
    %146 = vector.shape_cast %21 : vector<1x36xi1> to vector<1x36xi1>
    %147 = vector.broadcast %146 : vector<1x36xi1> to vector<8x36xi1>
    %148 = vector.broadcast %cst_19 : f32 to vector<8x36xf32>
    %149 = arith.select %147, %145, %148 : vector<8x36xi1>, vector<8x36xf32>
    %150 = vector.extract_strided_slice %32 {offsets = [0, 0], sizes = [8, 1], strides = [1, 1]} : vector<8x3xf32> to vector<8x1xf32>
    %151 = vector.broadcast %150 : vector<8x1xf32> to vector<8x36xf32>
    %152 = vector.broadcast %28 : vector<1x36xf32> to vector<8x36xf32>
    %153 = arith.mulf %151, %152 : vector<8x36xf32>
    %154 = vector.extract_strided_slice %32 {offsets = [0, 1], sizes = [8, 1], strides = [1, 1]} : vector<8x3xf32> to vector<8x1xf32>
    %155 = vector.broadcast %154 : vector<8x1xf32> to vector<8x36xf32>
    %156 = vector.broadcast %29 : vector<1x36xf32> to vector<8x36xf32>
    %157 = arith.mulf %155, %156 : vector<8x36xf32>
    %158 = arith.addf %153, %157 : vector<8x36xf32>
    %159 = vector.extract_strided_slice %32 {offsets = [0, 2], sizes = [8, 1], strides = [1, 1]} : vector<8x3xf32> to vector<8x1xf32>
    %160 = vector.broadcast %159 : vector<8x1xf32> to vector<8x36xf32>
    %161 = vector.broadcast %30 : vector<1x36xf32> to vector<8x36xf32>
    %162 = arith.mulf %160, %161 : vector<8x36xf32>
    %163 = arith.addf %158, %162 : vector<8x36xf32>
    %164 = vector.broadcast %33 : vector<8x1xf32> to vector<8x36xf32>
    %165 = arith.addf %163, %164 : vector<8x36xf32>
    %cst_20 = arith.constant 2.000000e-01 : f32
    %166 = vector.broadcast %cst_20 : f32 to vector<8x36xf32>
    %167 = arith.mulf %166, %165 : vector<8x36xf32>
    %168 = arith.maximumf %165, %167 : vector<8x36xf32>
    %cst_21 = arith.constant 0.000000e+00 : f32
    %169 = vector.shape_cast %21 : vector<1x36xi1> to vector<1x36xi1>
    %170 = vector.broadcast %169 : vector<1x36xi1> to vector<8x36xi1>
    %171 = vector.broadcast %cst_21 : f32 to vector<8x36xf32>
    %172 = arith.select %170, %168, %171 : vector<8x36xi1>, vector<8x36xf32>
    %173 = vector.extract_strided_slice %32 {offsets = [0, 0], sizes = [8, 1], strides = [1, 1]} : vector<8x3xf32> to vector<8x1xf32>
    %174 = vector.broadcast %173 : vector<8x1xf32> to vector<8x36xf32>
    %175 = vector.broadcast %29 : vector<1x36xf32> to vector<8x36xf32>
    %176 = arith.mulf %174, %175 : vector<8x36xf32>
    %177 = vector.extract_strided_slice %32 {offsets = [0, 1], sizes = [8, 1], strides = [1, 1]} : vector<8x3xf32> to vector<8x1xf32>
    %178 = vector.broadcast %177 : vector<8x1xf32> to vector<8x36xf32>
    %179 = vector.broadcast %30 : vector<1x36xf32> to vector<8x36xf32>
    %180 = arith.mulf %178, %179 : vector<8x36xf32>
    %181 = arith.addf %176, %180 : vector<8x36xf32>
    %182 = vector.extract_strided_slice %32 {offsets = [0, 2], sizes = [8, 1], strides = [1, 1]} : vector<8x3xf32> to vector<8x1xf32>
    %183 = vector.broadcast %182 : vector<8x1xf32> to vector<8x36xf32>
    %184 = vector.broadcast %31 : vector<1x36xf32> to vector<8x36xf32>
    %185 = arith.mulf %183, %184 : vector<8x36xf32>
    %186 = arith.addf %181, %185 : vector<8x36xf32>
    %187 = vector.broadcast %33 : vector<8x1xf32> to vector<8x36xf32>
    %188 = arith.addf %186, %187 : vector<8x36xf32>
    %cst_22 = arith.constant 2.000000e-01 : f32
    %189 = vector.broadcast %cst_22 : f32 to vector<8x36xf32>
    %190 = arith.mulf %189, %188 : vector<8x36xf32>
    %191 = arith.maximumf %188, %190 : vector<8x36xf32>
    %cst_23 = arith.constant 0.000000e+00 : f32
    %192 = vector.shape_cast %21 : vector<1x36xi1> to vector<1x36xi1>
    %193 = vector.broadcast %192 : vector<1x36xi1> to vector<8x36xi1>
    %194 = vector.broadcast %cst_23 : f32 to vector<8x36xf32>
    %195 = arith.select %193, %191, %194 : vector<8x36xi1>, vector<8x36xf32>
    %196 = vector.extract_strided_slice %32 {offsets = [0, 0], sizes = [8, 1], strides = [1, 1]} : vector<8x3xf32> to vector<8x1xf32>
    %197 = vector.broadcast %196 : vector<8x1xf32> to vector<8x36xf32>
    %198 = vector.broadcast %30 : vector<1x36xf32> to vector<8x36xf32>
    %199 = arith.mulf %197, %198 : vector<8x36xf32>
    %200 = vector.extract_strided_slice %32 {offsets = [0, 1], sizes = [8, 1], strides = [1, 1]} : vector<8x3xf32> to vector<8x1xf32>
    %201 = vector.broadcast %200 : vector<8x1xf32> to vector<8x36xf32>
    %202 = vector.broadcast %31 : vector<1x36xf32> to vector<8x36xf32>
    %203 = arith.mulf %201, %202 : vector<8x36xf32>
    %204 = arith.addf %199, %203 : vector<8x36xf32>
    %c35_i32 = arith.constant 35 : i32
    %205 = tpu.dynamic_rotate %24 by %c35_i32 dim 1 : vector<1x36xf32>, i32 -> vector<1x36xf32>
    %206 = vector.extract_strided_slice %32 {offsets = [0, 2], sizes = [8, 1], strides = [1, 1]} : vector<8x3xf32> to vector<8x1xf32>
    %207 = vector.broadcast %206 : vector<8x1xf32> to vector<8x36xf32>
    %208 = vector.broadcast %205 : vector<1x36xf32> to vector<8x36xf32>
    %209 = arith.mulf %207, %208 : vector<8x36xf32>
    %210 = arith.addf %204, %209 : vector<8x36xf32>
    %211 = vector.broadcast %33 : vector<8x1xf32> to vector<8x36xf32>
    %212 = arith.addf %210, %211 : vector<8x36xf32>
    %cst_24 = arith.constant 2.000000e-01 : f32
    %213 = vector.broadcast %cst_24 : f32 to vector<8x36xf32>
    %214 = arith.mulf %213, %212 : vector<8x36xf32>
    %215 = arith.maximumf %212, %214 : vector<8x36xf32>
    %cst_25 = arith.constant 0.000000e+00 : f32
    %216 = vector.shape_cast %21 : vector<1x36xi1> to vector<1x36xi1>
    %217 = vector.broadcast %216 : vector<1x36xi1> to vector<8x36xi1>
    %218 = vector.broadcast %cst_25 : f32 to vector<8x36xf32>
    %219 = arith.select %217, %215, %218 : vector<8x36xi1>, vector<8x36xf32>
    %c0_26 = arith.constant 0 : index
    %c0_27 = arith.constant 0 : index
    %220 = vector.load %arg4[%c0_26, %c0_27] : memref<8x24xbf16, #tpu.memory_space<vmem>>, vector<8x24xbf16>
    %c0_28 = arith.constant 0 : index
    %c0_29 = arith.constant 0 : index
    %221 = vector.load %arg5[%c0_28, %c0_29] : memref<8x1xf32, #tpu.memory_space<vmem>>, vector<8x1xf32>
    %c1_i32_30 = arith.constant 1 : i32
    %222 = tpu.dynamic_rotate %219 by %c1_i32_30 dim 1 : vector<8x36xf32>, i32 -> vector<8x36xf32>
    %223 = tpu.concatenate %222, %57, %80 in 0 : vector<8x36xf32>, vector<8x36xf32>, vector<8x36xf32> -> vector<24x36xf32>
    %224 = arith.truncf %223 : vector<24x36xf32> to vector<24x36xbf16>
    %cst_31 = arith.constant dense<0.000000e+00> : vector<8x36xf32>
    %225 = tpu.matmul %220, %224, %cst_31 {dimension_numbers = #tpu.dot_dimension_numbers<[1], [0], [0], [1], [0, 0, 1, 1], [], []>} : vector<8x24xbf16>, vector<24x36xbf16>, vector<8x36xf32> -> vector<8x36xf32>
    %226 = vector.broadcast %221 : vector<8x1xf32> to vector<8x36xf32>
    %227 = arith.addf %225, %226 : vector<8x36xf32>
    %cst_32 = arith.constant 2.000000e-01 : f32
    %228 = vector.broadcast %cst_32 : f32 to vector<8x36xf32>
    %229 = arith.mulf %228, %227 : vector<8x36xf32>
    %230 = arith.maximumf %227, %229 : vector<8x36xf32>
    %cst_33 = arith.constant 0.000000e+00 : f32
    %231 = vector.shape_cast %21 : vector<1x36xi1> to vector<1x36xi1>
    %232 = vector.broadcast %231 : vector<1x36xi1> to vector<8x36xi1>
    %233 = vector.broadcast %cst_33 : f32 to vector<8x36xf32>
    %234 = arith.select %232, %230, %233 : vector<8x36xi1>, vector<8x36xf32>
    %235 = tpu.concatenate %80, %103, %126 in 0 : vector<8x36xf32>, vector<8x36xf32>, vector<8x36xf32> -> vector<24x36xf32>
    %236 = arith.truncf %235 : vector<24x36xf32> to vector<24x36xbf16>
    %cst_34 = arith.constant dense<0.000000e+00> : vector<8x36xf32>
    %237 = tpu.matmul %220, %236, %cst_34 {dimension_numbers = #tpu.dot_dimension_numbers<[1], [0], [0], [1], [0, 0, 1, 1], [], []>} : vector<8x24xbf16>, vector<24x36xbf16>, vector<8x36xf32> -> vector<8x36xf32>
    %238 = vector.broadcast %221 : vector<8x1xf32> to vector<8x36xf32>
    %239 = arith.addf %237, %238 : vector<8x36xf32>
    %cst_35 = arith.constant 2.000000e-01 : f32
    %240 = vector.broadcast %cst_35 : f32 to vector<8x36xf32>
    %241 = arith.mulf %240, %239 : vector<8x36xf32>
    %242 = arith.maximumf %239, %241 : vector<8x36xf32>
    %cst_36 = arith.constant 0.000000e+00 : f32
    %243 = vector.shape_cast %21 : vector<1x36xi1> to vector<1x36xi1>
    %244 = vector.broadcast %243 : vector<1x36xi1> to vector<8x36xi1>
    %245 = vector.broadcast %cst_36 : f32 to vector<8x36xf32>
    %246 = arith.select %244, %242, %245 : vector<8x36xi1>, vector<8x36xf32>
    %247 = tpu.concatenate %126, %149, %172 in 0 : vector<8x36xf32>, vector<8x36xf32>, vector<8x36xf32> -> vector<24x36xf32>
    %248 = arith.truncf %247 : vector<24x36xf32> to vector<24x36xbf16>
    %cst_37 = arith.constant dense<0.000000e+00> : vector<8x36xf32>
    %249 = tpu.matmul %220, %248, %cst_37 {dimension_numbers = #tpu.dot_dimension_numbers<[1], [0], [0], [1], [0, 0, 1, 1], [], []>} : vector<8x24xbf16>, vector<24x36xbf16>, vector<8x36xf32> -> vector<8x36xf32>
    %250 = vector.broadcast %221 : vector<8x1xf32> to vector<8x36xf32>
    %251 = arith.addf %249, %250 : vector<8x36xf32>
    %cst_38 = arith.constant 2.000000e-01 : f32
    %252 = vector.broadcast %cst_38 : f32 to vector<8x36xf32>
    %253 = arith.mulf %252, %251 : vector<8x36xf32>
    %254 = arith.maximumf %251, %253 : vector<8x36xf32>
    %cst_39 = arith.constant 0.000000e+00 : f32
    %255 = vector.shape_cast %21 : vector<1x36xi1> to vector<1x36xi1>
    %256 = vector.broadcast %255 : vector<1x36xi1> to vector<8x36xi1>
    %257 = vector.broadcast %cst_39 : f32 to vector<8x36xf32>
    %258 = arith.select %256, %254, %257 : vector<8x36xi1>, vector<8x36xf32>
    %259 = tpu.concatenate %172, %195, %219 in 0 : vector<8x36xf32>, vector<8x36xf32>, vector<8x36xf32> -> vector<24x36xf32>
    %260 = arith.truncf %259 : vector<24x36xf32> to vector<24x36xbf16>
    %cst_40 = arith.constant dense<0.000000e+00> : vector<8x36xf32>
    %261 = tpu.matmul %220, %260, %cst_40 {dimension_numbers = #tpu.dot_dimension_numbers<[1], [0], [0], [1], [0, 0, 1, 1], [], []>} : vector<8x24xbf16>, vector<24x36xbf16>, vector<8x36xf32> -> vector<8x36xf32>
    %262 = vector.broadcast %221 : vector<8x1xf32> to vector<8x36xf32>
    %263 = arith.addf %261, %262 : vector<8x36xf32>
    %cst_41 = arith.constant 2.000000e-01 : f32
    %264 = vector.broadcast %cst_41 : f32 to vector<8x36xf32>
    %265 = arith.mulf %264, %263 : vector<8x36xf32>
    %266 = arith.maximumf %263, %265 : vector<8x36xf32>
    %cst_42 = arith.constant 0.000000e+00 : f32
    %267 = vector.shape_cast %21 : vector<1x36xi1> to vector<1x36xi1>
    %268 = vector.broadcast %267 : vector<1x36xi1> to vector<8x36xi1>
    %269 = vector.broadcast %cst_42 : f32 to vector<8x36xf32>
    %270 = arith.select %268, %266, %269 : vector<8x36xi1>, vector<8x36xf32>
    %c0_43 = arith.constant 0 : index
    %c0_44 = arith.constant 0 : index
    %271 = vector.load %arg6[%c0_43, %c0_44] : memref<16x24xbf16, #tpu.memory_space<vmem>>, vector<16x24xbf16>
    %c0_45 = arith.constant 0 : index
    %c0_46 = arith.constant 0 : index
    %272 = vector.load %arg7[%c0_45, %c0_46] : memref<16x1xf32, #tpu.memory_space<vmem>>, vector<16x1xf32>
    %c1_i32_47 = arith.constant 1 : i32
    %273 = tpu.dynamic_rotate %270 by %c1_i32_47 dim 1 : vector<8x36xf32>, i32 -> vector<8x36xf32>
    %274 = tpu.concatenate %273, %234, %246 in 0 : vector<8x36xf32>, vector<8x36xf32>, vector<8x36xf32> -> vector<24x36xf32>
    %275 = arith.truncf %274 : vector<24x36xf32> to vector<24x36xbf16>
    %cst_48 = arith.constant dense<0.000000e+00> : vector<16x36xf32>
    %276 = tpu.matmul %271, %275, %cst_48 {dimension_numbers = #tpu.dot_dimension_numbers<[1], [0], [0], [1], [0, 0, 1, 1], [], []>} : vector<16x24xbf16>, vector<24x36xbf16>, vector<16x36xf32> -> vector<16x36xf32>
    %277 = vector.broadcast %272 : vector<16x1xf32> to vector<16x36xf32>
    %278 = arith.addf %276, %277 : vector<16x36xf32>
    %cst_49 = arith.constant 2.000000e-01 : f32
    %279 = vector.broadcast %cst_49 : f32 to vector<16x36xf32>
    %280 = arith.mulf %279, %278 : vector<16x36xf32>
    %281 = arith.maximumf %278, %280 : vector<16x36xf32>
    %cst_50 = arith.constant 0.000000e+00 : f32
    %282 = vector.shape_cast %21 : vector<1x36xi1> to vector<1x36xi1>
    %283 = vector.broadcast %282 : vector<1x36xi1> to vector<16x36xi1>
    %284 = vector.broadcast %cst_50 : f32 to vector<16x36xf32>
    %285 = arith.select %283, %281, %284 : vector<16x36xi1>, vector<16x36xf32>
    %286 = tpu.concatenate %234, %246, %258 in 0 : vector<8x36xf32>, vector<8x36xf32>, vector<8x36xf32> -> vector<24x36xf32>
    %287 = arith.truncf %286 : vector<24x36xf32> to vector<24x36xbf16>
    %cst_51 = arith.constant dense<0.000000e+00> : vector<16x36xf32>
    %288 = tpu.matmul %271, %287, %cst_51 {dimension_numbers = #tpu.dot_dimension_numbers<[1], [0], [0], [1], [0, 0, 1, 1], [], []>} : vector<16x24xbf16>, vector<24x36xbf16>, vector<16x36xf32> -> vector<16x36xf32>
    %289 = vector.broadcast %272 : vector<16x1xf32> to vector<16x36xf32>
    %290 = arith.addf %288, %289 : vector<16x36xf32>
    %cst_52 = arith.constant 2.000000e-01 : f32
    %291 = vector.broadcast %cst_52 : f32 to vector<16x36xf32>
    %292 = arith.mulf %291, %290 : vector<16x36xf32>
    %293 = arith.maximumf %290, %292 : vector<16x36xf32>
    %cst_53 = arith.constant 0.000000e+00 : f32
    %294 = vector.shape_cast %21 : vector<1x36xi1> to vector<1x36xi1>
    %295 = vector.broadcast %294 : vector<1x36xi1> to vector<16x36xi1>
    %296 = vector.broadcast %cst_53 : f32 to vector<16x36xf32>
    %297 = arith.select %295, %293, %296 : vector<16x36xi1>, vector<16x36xf32>
    %298 = tpu.concatenate %246, %258, %270 in 0 : vector<8x36xf32>, vector<8x36xf32>, vector<8x36xf32> -> vector<24x36xf32>
    %299 = arith.truncf %298 : vector<24x36xf32> to vector<24x36xbf16>
    %cst_54 = arith.constant dense<0.000000e+00> : vector<16x36xf32>
    %300 = tpu.matmul %271, %299, %cst_54 {dimension_numbers = #tpu.dot_dimension_numbers<[1], [0], [0], [1], [0, 0, 1, 1], [], []>} : vector<16x24xbf16>, vector<24x36xbf16>, vector<16x36xf32> -> vector<16x36xf32>
    %301 = vector.broadcast %272 : vector<16x1xf32> to vector<16x36xf32>
    %302 = arith.addf %300, %301 : vector<16x36xf32>
    %cst_55 = arith.constant 2.000000e-01 : f32
    %303 = vector.broadcast %cst_55 : f32 to vector<16x36xf32>
    %304 = arith.mulf %303, %302 : vector<16x36xf32>
    %305 = arith.maximumf %302, %304 : vector<16x36xf32>
    %cst_56 = arith.constant 0.000000e+00 : f32
    %306 = vector.shape_cast %21 : vector<1x36xi1> to vector<1x36xi1>
    %307 = vector.broadcast %306 : vector<1x36xi1> to vector<16x36xi1>
    %308 = vector.broadcast %cst_56 : f32 to vector<16x36xf32>
    %309 = arith.select %307, %305, %308 : vector<16x36xi1>, vector<16x36xf32>
    %c35_i32_57 = arith.constant 35 : i32
    %310 = tpu.dynamic_rotate %234 by %c35_i32_57 dim 1 : vector<8x36xf32>, i32 -> vector<8x36xf32>
    %311 = tpu.concatenate %258, %270, %310 in 0 : vector<8x36xf32>, vector<8x36xf32>, vector<8x36xf32> -> vector<24x36xf32>
    %312 = arith.truncf %311 : vector<24x36xf32> to vector<24x36xbf16>
    %cst_58 = arith.constant dense<0.000000e+00> : vector<16x36xf32>
    %313 = tpu.matmul %271, %312, %cst_58 {dimension_numbers = #tpu.dot_dimension_numbers<[1], [0], [0], [1], [0, 0, 1, 1], [], []>} : vector<16x24xbf16>, vector<24x36xbf16>, vector<16x36xf32> -> vector<16x36xf32>
    %314 = vector.broadcast %272 : vector<16x1xf32> to vector<16x36xf32>
    %315 = arith.addf %313, %314 : vector<16x36xf32>
    %cst_59 = arith.constant 2.000000e-01 : f32
    %316 = vector.broadcast %cst_59 : f32 to vector<16x36xf32>
    %317 = arith.mulf %316, %315 : vector<16x36xf32>
    %318 = arith.maximumf %315, %317 : vector<16x36xf32>
    %cst_60 = arith.constant 0.000000e+00 : f32
    %319 = vector.shape_cast %21 : vector<1x36xi1> to vector<1x36xi1>
    %320 = vector.broadcast %319 : vector<1x36xi1> to vector<16x36xi1>
    %321 = vector.broadcast %cst_60 : f32 to vector<16x36xf32>
    %322 = arith.select %320, %318, %321 : vector<16x36xi1>, vector<16x36xf32>
    %c0_61 = arith.constant 0 : index
    %c0_62 = arith.constant 0 : index
    %323 = vector.load %arg8[%c0_61, %c0_62] : memref<16x48xbf16, #tpu.memory_space<vmem>>, vector<16x48xbf16>
    %c0_63 = arith.constant 0 : index
    %c0_64 = arith.constant 0 : index
    %324 = vector.load %arg9[%c0_63, %c0_64] : memref<16x1xf32, #tpu.memory_space<vmem>>, vector<16x1xf32>
    %c1_i32_65 = arith.constant 1 : i32
    %325 = tpu.dynamic_rotate %322 by %c1_i32_65 dim 1 : vector<16x36xf32>, i32 -> vector<16x36xf32>
    %326 = tpu.concatenate %325, %285, %297 in 0 : vector<16x36xf32>, vector<16x36xf32>, vector<16x36xf32> -> vector<48x36xf32>
    %327 = arith.truncf %326 : vector<48x36xf32> to vector<48x36xbf16>
    %cst_66 = arith.constant dense<0.000000e+00> : vector<16x36xf32>
    %328 = tpu.matmul %323, %327, %cst_66 {dimension_numbers = #tpu.dot_dimension_numbers<[1], [0], [0], [1], [0, 0, 1, 1], [], []>} : vector<16x48xbf16>, vector<48x36xbf16>, vector<16x36xf32> -> vector<16x36xf32>
    %329 = vector.broadcast %324 : vector<16x1xf32> to vector<16x36xf32>
    %330 = arith.addf %328, %329 : vector<16x36xf32>
    %cst_67 = arith.constant 2.000000e-01 : f32
    %331 = vector.broadcast %cst_67 : f32 to vector<16x36xf32>
    %332 = arith.mulf %331, %330 : vector<16x36xf32>
    %333 = arith.maximumf %330, %332 : vector<16x36xf32>
    %cst_68 = arith.constant 0.000000e+00 : f32
    %334 = vector.shape_cast %21 : vector<1x36xi1> to vector<1x36xi1>
    %335 = vector.broadcast %334 : vector<1x36xi1> to vector<16x36xi1>
    %336 = vector.broadcast %cst_68 : f32 to vector<16x36xf32>
    %337 = arith.select %335, %333, %336 : vector<16x36xi1>, vector<16x36xf32>
    %338 = tpu.concatenate %297, %309, %322 in 0 : vector<16x36xf32>, vector<16x36xf32>, vector<16x36xf32> -> vector<48x36xf32>
    %339 = arith.truncf %338 : vector<48x36xf32> to vector<48x36xbf16>
    %cst_69 = arith.constant dense<0.000000e+00> : vector<16x36xf32>
    %340 = tpu.matmul %323, %339, %cst_69 {dimension_numbers = #tpu.dot_dimension_numbers<[1], [0], [0], [1], [0, 0, 1, 1], [], []>} : vector<16x48xbf16>, vector<48x36xbf16>, vector<16x36xf32> -> vector<16x36xf32>
    %341 = vector.broadcast %324 : vector<16x1xf32> to vector<16x36xf32>
    %342 = arith.addf %340, %341 : vector<16x36xf32>
    %cst_70 = arith.constant 2.000000e-01 : f32
    %343 = vector.broadcast %cst_70 : f32 to vector<16x36xf32>
    %344 = arith.mulf %343, %342 : vector<16x36xf32>
    %345 = arith.maximumf %342, %344 : vector<16x36xf32>
    %cst_71 = arith.constant 0.000000e+00 : f32
    %346 = vector.shape_cast %21 : vector<1x36xi1> to vector<1x36xi1>
    %347 = vector.broadcast %346 : vector<1x36xi1> to vector<16x36xi1>
    %348 = vector.broadcast %cst_71 : f32 to vector<16x36xf32>
    %349 = arith.select %347, %345, %348 : vector<16x36xi1>, vector<16x36xf32>
    %c0_72 = arith.constant 0 : index
    %c0_73 = arith.constant 0 : index
    %350 = vector.load %arg10[%c0_72, %c0_73] : memref<32x48xbf16, #tpu.memory_space<vmem>>, vector<32x48xbf16>
    %c0_74 = arith.constant 0 : index
    %c0_75 = arith.constant 0 : index
    %351 = vector.load %arg11[%c0_74, %c0_75] : memref<32x1xf32, #tpu.memory_space<vmem>>, vector<32x1xf32>
    %c1_i32_76 = arith.constant 1 : i32
    %352 = tpu.dynamic_rotate %349 by %c1_i32_76 dim 1 : vector<16x36xf32>, i32 -> vector<16x36xf32>
    %353 = tpu.concatenate %352, %337, %349 in 0 : vector<16x36xf32>, vector<16x36xf32>, vector<16x36xf32> -> vector<48x36xf32>
    %354 = arith.truncf %353 : vector<48x36xf32> to vector<48x36xbf16>
    %cst_77 = arith.constant dense<0.000000e+00> : vector<32x36xf32>
    %355 = tpu.matmul %350, %354, %cst_77 {dimension_numbers = #tpu.dot_dimension_numbers<[1], [0], [0], [1], [0, 0, 1, 1], [], []>} : vector<32x48xbf16>, vector<48x36xbf16>, vector<32x36xf32> -> vector<32x36xf32>
    %356 = vector.broadcast %351 : vector<32x1xf32> to vector<32x36xf32>
    %357 = arith.addf %355, %356 : vector<32x36xf32>
    %cst_78 = arith.constant 2.000000e-01 : f32
    %358 = vector.broadcast %cst_78 : f32 to vector<32x36xf32>
    %359 = arith.mulf %358, %357 : vector<32x36xf32>
    %360 = arith.maximumf %357, %359 : vector<32x36xf32>
    %cst_79 = arith.constant 0.000000e+00 : f32
    %361 = vector.shape_cast %21 : vector<1x36xi1> to vector<1x36xi1>
    %362 = vector.broadcast %361 : vector<1x36xi1> to vector<32x36xi1>
    %363 = vector.broadcast %cst_79 : f32 to vector<32x36xf32>
    %364 = arith.select %362, %360, %363 : vector<32x36xi1>, vector<32x36xf32>
    %c35_i32_80 = arith.constant 35 : i32
    %365 = tpu.dynamic_rotate %337 by %c35_i32_80 dim 1 : vector<16x36xf32>, i32 -> vector<16x36xf32>
    %366 = tpu.concatenate %337, %349, %365 in 0 : vector<16x36xf32>, vector<16x36xf32>, vector<16x36xf32> -> vector<48x36xf32>
    %367 = arith.truncf %366 : vector<48x36xf32> to vector<48x36xbf16>
    %cst_81 = arith.constant dense<0.000000e+00> : vector<32x36xf32>
    %368 = tpu.matmul %350, %367, %cst_81 {dimension_numbers = #tpu.dot_dimension_numbers<[1], [0], [0], [1], [0, 0, 1, 1], [], []>} : vector<32x48xbf16>, vector<48x36xbf16>, vector<32x36xf32> -> vector<32x36xf32>
    %369 = vector.broadcast %351 : vector<32x1xf32> to vector<32x36xf32>
    %370 = arith.addf %368, %369 : vector<32x36xf32>
    %cst_82 = arith.constant 2.000000e-01 : f32
    %371 = vector.broadcast %cst_82 : f32 to vector<32x36xf32>
    %372 = arith.mulf %371, %370 : vector<32x36xf32>
    %373 = arith.maximumf %370, %372 : vector<32x36xf32>
    %cst_83 = arith.constant 0.000000e+00 : f32
    %374 = vector.shape_cast %21 : vector<1x36xi1> to vector<1x36xi1>
    %375 = vector.broadcast %374 : vector<1x36xi1> to vector<32x36xi1>
    %376 = vector.broadcast %cst_83 : f32 to vector<32x36xf32>
    %377 = arith.select %375, %373, %376 : vector<32x36xi1>, vector<32x36xf32>
    %c0_84 = arith.constant 0 : index
    %c0_85 = arith.constant 0 : index
    %378 = vector.load %arg12[%c0_84, %c0_85] : memref<32x96xbf16, #tpu.memory_space<vmem>>, vector<32x96xbf16>
    %c0_86 = arith.constant 0 : index
    %c0_87 = arith.constant 0 : index
    %379 = vector.load %arg13[%c0_86, %c0_87] : memref<32x1xf32, #tpu.memory_space<vmem>>, vector<32x1xf32>
    %c1_i32_88 = arith.constant 1 : i32
    %380 = tpu.dynamic_rotate %377 by %c1_i32_88 dim 1 : vector<32x36xf32>, i32 -> vector<32x36xf32>
    %381 = tpu.concatenate %380, %364, %377 in 0 : vector<32x36xf32>, vector<32x36xf32>, vector<32x36xf32> -> vector<96x36xf32>
    %382 = arith.truncf %381 : vector<96x36xf32> to vector<96x36xbf16>
    %cst_89 = arith.constant dense<0.000000e+00> : vector<32x36xf32>
    %383 = tpu.matmul %378, %382, %cst_89 {dimension_numbers = #tpu.dot_dimension_numbers<[1], [0], [0], [1], [0, 0, 1, 1], [], []>} : vector<32x96xbf16>, vector<96x36xbf16>, vector<32x36xf32> -> vector<32x36xf32>
    %384 = vector.broadcast %379 : vector<32x1xf32> to vector<32x36xf32>
    %385 = arith.addf %383, %384 : vector<32x36xf32>
    %cst_90 = arith.constant 2.000000e-01 : f32
    %386 = vector.broadcast %cst_90 : f32 to vector<32x36xf32>
    %387 = arith.mulf %386, %385 : vector<32x36xf32>
    %388 = arith.maximumf %385, %387 : vector<32x36xf32>
    %cst_91 = arith.constant 0.000000e+00 : f32
    %389 = vector.shape_cast %21 : vector<1x36xi1> to vector<1x36xi1>
    %390 = vector.broadcast %389 : vector<1x36xi1> to vector<32x36xi1>
    %391 = vector.broadcast %cst_91 : f32 to vector<32x36xf32>
    %392 = arith.select %390, %388, %391 : vector<32x36xi1>, vector<32x36xf32>
    %c0_92 = arith.constant 0 : index
    %c0_93 = arith.constant 0 : index
    %393 = vector.load %arg18[%c0_92, %c0_93] : memref<36x2xf32, #tpu.memory_space<vmem>>, vector<36x2xf32>
    %cst_94 = arith.constant dense<0.000000e+00> : vector<32x2xf32>
    %394 = tpu.matmul %392, %393, %cst_94 {dimension_numbers = #tpu.dot_dimension_numbers<[1], [0], [0], [1], [0, 0, 1, 1], [], []>} : vector<32x36xf32>, vector<36x2xf32>, vector<32x2xf32> -> vector<32x2xf32>
    %c0_95 = arith.constant 0 : index
    %c0_96 = arith.constant 0 : index
    %395 = vector.load %arg14[%c0_95, %c0_96] : memref<64x32xf32, #tpu.memory_space<vmem>>, vector<64x32xf32>
    %cst_97 = arith.constant dense<0.000000e+00> : vector<64x2xf32>
    %396 = tpu.matmul %395, %394, %cst_97 {dimension_numbers = #tpu.dot_dimension_numbers<[1], [0], [0], [1], [0, 0, 1, 1], [], []>} : vector<64x32xf32>, vector<32x2xf32>, vector<64x2xf32> -> vector<64x2xf32>
    %c0_98 = arith.constant 0 : index
    %c0_99 = arith.constant 0 : index
    %397 = vector.load %arg15[%c0_98, %c0_99] : memref<64x1xf32, #tpu.memory_space<vmem>>, vector<64x1xf32>
    %398 = vector.broadcast %397 : vector<64x1xf32> to vector<64x2xf32>
    %399 = arith.addf %396, %398 : vector<64x2xf32>
    %cst_100 = arith.constant 2.000000e-01 : f32
    %400 = vector.broadcast %cst_100 : f32 to vector<64x2xf32>
    %401 = arith.mulf %400, %399 : vector<64x2xf32>
    %402 = arith.maximumf %399, %401 : vector<64x2xf32>
    %c0_101 = arith.constant 0 : index
    %c0_102 = arith.constant 0 : index
    %403 = vector.load %arg16[%c0_101, %c0_102] : memref<1x64xf32, #tpu.memory_space<vmem>>, vector<1x64xf32>
    %cst_103 = arith.constant dense<0.000000e+00> : vector<1x2xf32>
    %404 = tpu.matmul %403, %402, %cst_103 {dimension_numbers = #tpu.dot_dimension_numbers<[1], [0], [0], [1], [0, 0, 1, 1], [], []>} : vector<1x64xf32>, vector<64x2xf32>, vector<1x2xf32> -> vector<1x2xf32>
    %c0_104 = arith.constant 0 : index
    %c0_105 = arith.constant 0 : index
    %405 = vector.load %arg17[%c0_104, %c0_105] : memref<1x1xf32, #tpu.memory_space<vmem>>, vector<1x1xf32>
    %406 = vector.broadcast %405 : vector<1x1xf32> to vector<1x2xf32>
    %407 = arith.addf %404, %406 : vector<1x2xf32>
    %c0_106 = arith.constant 0 : index
    %c0_107 = arith.constant 0 : index
    %c0_108 = arith.constant 0 : index
    %408 = vector.load %arg19[%c0_106, %c0_107, %c0_108] : memref<1x1x2xf32, #tpu.memory_space<vmem>>, vector<1x1x2xf32>
    %409 = vector.shape_cast %408 : vector<1x1x2xf32> to vector<1x2xf32>
    %410 = vector.shape_cast %407 : vector<1x2xf32> to vector<1x1x2xf32>
    tpu.vector_store %arg19[%c0_106, %c0_107, %c0_108], %410 {strides = array<i32>} : memref<1x1x2xf32, #tpu.memory_space<vmem>>, vector<1x1x2xf32>,
    return
  }
  func.func @transform_0(%arg0: i32) -> (i32, i32, i32) {
    %c0_i32 = arith.constant 0 : i32
    %c0_i32_0 = arith.constant 0 : i32
    %c0_i32_1 = arith.constant 0 : i32
    return %arg0, %c0_i32, %c0_i32_0 : i32, i32, i32
  }
  func.func @transform_1(%arg0: i32) -> (i32, i32) {
    %c0_i32 = arith.constant 0 : i32
    %c0_i32_0 = arith.constant 0 : i32
    %c0_i32_1 = arith.constant 0 : i32
    return %c0_i32, %c0_i32_0 : i32, i32
  }
  func.func @transform_2(%arg0: i32) -> (i32, i32) {
    %c0_i32 = arith.constant 0 : i32
    %c0_i32_0 = arith.constant 0 : i32
    %c0_i32_1 = arith.constant 0 : i32
    return %c0_i32, %c0_i32_0 : i32, i32
  }
  func.func @transform_3(%arg0: i32) -> (i32, i32) {
    %c0_i32 = arith.constant 0 : i32
    %c0_i32_0 = arith.constant 0 : i32
    %c0_i32_1 = arith.constant 0 : i32
    return %c0_i32, %c0_i32_0 : i32, i32
  }
  func.func @transform_4(%arg0: i32) -> (i32, i32) {
    %c0_i32 = arith.constant 0 : i32
    %c0_i32_0 = arith.constant 0 : i32
    %c0_i32_1 = arith.constant 0 : i32
    return %c0_i32, %c0_i32_0 : i32, i32
  }
  func.func @transform_5(%arg0: i32) -> (i32, i32) {
    %c0_i32 = arith.constant 0 : i32
    %c0_i32_0 = arith.constant 0 : i32
    %c0_i32_1 = arith.constant 0 : i32
    return %c0_i32, %c0_i32_0 : i32, i32
  }
  func.func @transform_6(%arg0: i32) -> (i32, i32) {
    %c0_i32 = arith.constant 0 : i32
    %c0_i32_0 = arith.constant 0 : i32
    %c0_i32_1 = arith.constant 0 : i32
    return %c0_i32, %c0_i32_0 : i32, i32
  }
  func.func @transform_7(%arg0: i32) -> (i32, i32) {
    %c0_i32 = arith.constant 0 : i32
    %c0_i32_0 = arith.constant 0 : i32
    %c0_i32_1 = arith.constant 0 : i32
    return %c0_i32, %c0_i32_0 : i32, i32
  }
  func.func @transform_8(%arg0: i32) -> (i32, i32) {
    %c0_i32 = arith.constant 0 : i32
    %c0_i32_0 = arith.constant 0 : i32
    %c0_i32_1 = arith.constant 0 : i32
    return %c0_i32, %c0_i32_0 : i32, i32
  }
  func.func @transform_9(%arg0: i32) -> (i32, i32) {
    %c0_i32 = arith.constant 0 : i32
    %c0_i32_0 = arith.constant 0 : i32
    %c0_i32_1 = arith.constant 0 : i32
    return %c0_i32, %c0_i32_0 : i32, i32
  }
  func.func @transform_10(%arg0: i32) -> (i32, i32) {
    %c0_i32 = arith.constant 0 : i32
    %c0_i32_0 = arith.constant 0 : i32
    %c0_i32_1 = arith.constant 0 : i32
    return %c0_i32, %c0_i32_0 : i32, i32
  }
  func.func @transform_11(%arg0: i32) -> (i32, i32) {
    %c0_i32 = arith.constant 0 : i32
    %c0_i32_0 = arith.constant 0 : i32
    %c0_i32_1 = arith.constant 0 : i32
    return %c0_i32, %c0_i32_0 : i32, i32
  }
  func.func @transform_12(%arg0: i32) -> (i32, i32) {
    %c0_i32 = arith.constant 0 : i32
    %c0_i32_0 = arith.constant 0 : i32
    %c0_i32_1 = arith.constant 0 : i32
    return %c0_i32, %c0_i32_0 : i32, i32
  }
  func.func @transform_13(%arg0: i32) -> (i32, i32) {
    %c0_i32 = arith.constant 0 : i32
    %c0_i32_0 = arith.constant 0 : i32
    %c0_i32_1 = arith.constant 0 : i32
    return %c0_i32, %c0_i32_0 : i32, i32
  }
  func.func @transform_14(%arg0: i32) -> (i32, i32) {
    %c0_i32 = arith.constant 0 : i32
    %c0_i32_0 = arith.constant 0 : i32
    %c0_i32_1 = arith.constant 0 : i32
    return %c0_i32, %c0_i32_0 : i32, i32
  }
  func.func @transform_15(%arg0: i32) -> (i32, i32) {
    %c0_i32 = arith.constant 0 : i32
    %c0_i32_0 = arith.constant 0 : i32
    %c0_i32_1 = arith.constant 0 : i32
    return %c0_i32, %c0_i32_0 : i32, i32
  }
  func.func @transform_16(%arg0: i32) -> (i32, i32) {
    %c0_i32 = arith.constant 0 : i32
    %c0_i32_0 = arith.constant 0 : i32
    %c0_i32_1 = arith.constant 0 : i32
    return %c0_i32, %c0_i32_0 : i32, i32
  }
  func.func @transform_17(%arg0: i32) -> (i32, i32) {
    %c0_i32 = arith.constant 0 : i32
    %c0_i32_0 = arith.constant 0 : i32
    %c0_i32_1 = arith.constant 0 : i32
    return %c0_i32, %c0_i32_0 : i32, i32
  }
  func.func @transform_18(%arg0: i32) -> (i32, i32, i32) {
    %c0_i32 = arith.constant 0 : i32
    %c0_i32_0 = arith.constant 0 : i32
    %c0_i32_1 = arith.constant 0 : i32
    return %arg0, %c0_i32, %c0_i32_0 : i32, i32, i32
  }
}

</mosaic_0001>

<llo_original>
// kernel: tpu_custom_call.1
$region0: #{tpu_custom_call.1}
  #allocation0 [shape = 'u32[]', space=smem, size = 0x4, offset = 0x4, fixed_abs, tag = 'smem constant byte address 0x4 - core index']
  #allocation1 [shape = 'u32[144,128]{1,0:T(1,128)}', space=vmem, size = 0x12000, scoped, tag = 'internal scratch']
  #allocation2 [shape = 'f32[1,1]{1,0:T(1,128)S(1)}', space=vmem, size = 0x200, scoped, tag = 'scoped memory for tpu_custom_call.1']
  %s0 = inlined_call_operand.vmem [shape: f32[2,8,36], index: 0, kind: input, shape index: {}]
  %s1 = inlined_call_operand.vmem [shape: f32[8,3], index: 1, kind: input, shape index: {}]
  %s2 = inlined_call_operand.vmem [shape: f32[8,1], index: 2, kind: input, shape index: {}]
  %s3 = inlined_call_operand.vmem [shape: bf16[8,24], index: 3, kind: input, shape index: {}]
  %s4 = inlined_call_operand.vmem [shape: f32[8,1], index: 4, kind: input, shape index: {}]
  %s5 = inlined_call_operand.vmem [shape: bf16[16,24], index: 5, kind: input, shape index: {}]
  %s6 = inlined_call_operand.vmem [shape: f32[16,1], index: 6, kind: input, shape index: {}]
  %s7 = inlined_call_operand.vmem [shape: bf16[16,48], index: 7, kind: input, shape index: {}]
  %s8 = inlined_call_operand.vmem [shape: f32[16,1], index: 8, kind: input, shape index: {}]
  %s9 = inlined_call_operand.vmem [shape: bf16[32,48], index: 9, kind: input, shape index: {}]
  %s10 = inlined_call_operand.vmem [shape: f32[32,1], index: 10, kind: input, shape index: {}]
  %s11 = inlined_call_operand.vmem [shape: bf16[32,96], index: 11, kind: input, shape index: {}]
  %s12 = inlined_call_operand.vmem [shape: f32[32,1], index: 12, kind: input, shape index: {}]
  %s13 = inlined_call_operand.vmem [shape: f32[64,32], index: 13, kind: input, shape index: {}]
  %s14 = inlined_call_operand.vmem [shape: f32[64,1], index: 14, kind: input, shape index: {}]
  %s15 = inlined_call_operand.vmem [shape: f32[1,64], index: 15, kind: input, shape index: {}]
  %s16 = inlined_call_operand.<no memory space> [shape: f32[1,1], index: 16, kind: input, shape index: {}]
  %s17 = inlined_call_operand.vmem [shape: f32[36,2], index: 17, kind: input, shape index: {}]
  %s18 = inlined_call_operand.hbm [shape: f32[2,1,2], index: 18, kind: output, shape index: {}]
  %s19 = sld [smem:[#allocation0]]
  $region105: #{tpu_custom_call.1} parent=0
    _
  %s21 = ssub.s32 1, %s19
  %s22 = scalar_select 0, %s21, %s19
  %v23 = vstv %s16
  %24 = vst [vmem:[#allocation2] sm:$0x1] %v23
  $region1: #{tpu_custom_call.1} parent=0
    #allocation3 [shape = 'u8[1024]{0}', space=vmem, size = 0x400, scoped, tag = 'output window, operand 0']
    #allocation4 [shape = 's32[2]{0}', space=sflag, size = 0x8, scoped, tag = 'scoped memory for tpu_custom_call.1']
    %25 = vsyncpa [#allocation4], 0
    %s26 = scalar_lea.sflag [#allocation4], 1
    %27 = vsyncpa %s26, 0
    loop: start=0, step=1, limit=4
    $region2: #{tpu_custom_call.1} parent=1 // loop_pre_header
      _
    $region3: #{tpu_custom_call.1} parent=1 // loop_header
      %s29 = sphi 0, %s33
      %p30 = scmp.ge.s32.totalorder %s29, 4
      %s39 = sphi 0, %s41
      %s42 = sphi 0, %s39
      %s43 = sphi 0, %s42
      %s59 = sphi 0, %s43
      %s63 = sphi 0, %s63
      %s65 = sphi 0, %s63
      %s66 = sphi 0, %s65
      %s80 = sphi 0, %s66
      %s84 = sphi 0, %s84
      %s86 = sphi 0, %s84
      %s87 = sphi 0, %s86
      %s101 = sphi 0, %s87
      %s105 = sphi 0, %s105
      %s107 = sphi 0, %s105
      %s108 = sphi 0, %s107
      %s122 = sphi 0, %s108
      %s126 = sphi 0, %s126
      %s128 = sphi 0, %s126
      %s129 = sphi 0, %s128
      %s143 = sphi 0, %s129
      %s147 = sphi 0, %s147
      %s149 = sphi 0, %s147
      %s150 = sphi 0, %s149
      %s164 = sphi 0, %s150
      %s168 = sphi 0, %s168
      %s170 = sphi 0, %s168
      %s171 = sphi 0, %s170
      %s185 = sphi 0, %s171
      %s189 = sphi 0, %s189
      %s191 = sphi 0, %s189
      %s192 = sphi 0, %s191
      %s206 = sphi 0, %s192
      %s210 = sphi 0, %s210
      %s212 = sphi 0, %s210
      %s213 = sphi 0, %s212
      %s227 = sphi 0, %s213
      %s231 = sphi 0, %s231
      %s233 = sphi 0, %s231
      %s234 = sphi 0, %s233
      %s248 = sphi 0, %s234
      %s252 = sphi 0, %s252
      %s254 = sphi 0, %s252
      %s255 = sphi 0, %s254
      %s269 = sphi 0, %s255
      %s273 = sphi 0, %s273
      %s275 = sphi 0, %s273
      %s276 = sphi 0, %s275
      %s290 = sphi 0, %s276
      %s294 = sphi 0, %s294
      %s296 = sphi 0, %s294
      %s297 = sphi 0, %s296
      %s311 = sphi 0, %s297
      %s315 = sphi 0, %s315
      %s317 = sphi 0, %s315
      %s318 = sphi 0, %s317
      %s332 = sphi 0, %s318
      %s336 = sphi 0, %s336
      %s338 = sphi 0, %s336
      %s339 = sphi 0, %s338
      %s353 = sphi 0, %s339
      %s357 = sphi 0, %s357
      %s359 = sphi 0, %s357
      %s360 = sphi 0, %s359
      %s374 = sphi 0, %s360
      %s378 = sphi 0, %s378
      %s380 = sphi 0, %s378
      %s381 = sphi 0, %s380
      %s395 = sphi 0, %s381
      %s399 = sphi 0, %s399
      %s401 = sphi 0, %s399
      %s402 = sphi 0, %s401
      %s416 = sphi 0, %s402
      %s422 = sphi 0, %s424
      %s425 = sphi 0, %s422
      %s426 = sphi 0, %s425
      %s442 = sphi 0, %s426
    $region4: #{tpu_custom_call.1} parent=1 // loop_header_branch
      %32 = sbr.rel (%p30) target = $region8
    $region5: #{tpu_custom_call.1} parent=1 // loop_body
      %s34 = ssub.s32 %s29, 1
      %s35 = ssub.s32 %s29, 2
      %s36 = sadd.s32 %s29, 1
      %s37 = ssub.s32 %s29, %s36
      %p38 = scmp.eq.s32.totalorder %s37, 0
      %s40 = sadd.s32 %s39, 1
      %s41 = scalar_select %p38, %s39, %s40
      %p44 = pneg %p38
      %p45 = scmp.eq.s32.totalorder %s29, 1
      %p46 = por %p44, %p45
      %p47 = scmp.ne.s32.totalorder %s39, %s42
      %p48 = scmp.eq.s32.totalorder %s29, 0
      %p49 = por %p47, %p48
      %p50 = scmp.ne.s32.totalorder %s39, %s42
      %p51 = scmp.eq.s32.totalorder %s34, 1
      %p52 = por %p50, %p51
      %p53 = scmp.ne.s32.totalorder %s42, %s43
      %p54 = scmp.eq.s32.totalorder %s34, 0
      %p55 = por %p53, %p54
      %p56 = scmp.ne.s32.totalorder %s42, %s43
      %p57 = scmp.eq.s32.totalorder %s35, 1
      %p58 = por %p56, %p57
      %p60 = scmp.ne.s32.totalorder %s43, %s59
      %p61 = scmp.eq.s32.totalorder %s35, 0
      %p62 = por %p60, %p61
      %s64 = sadd.s32 %s63, 1
      %p67 = scmp.eq.s32.totalorder %s29, 1
      %p68 = scmp.ne.s32.totalorder %s63, %s65
      %p69 = scmp.eq.s32.totalorder %s29, 0
      %p70 = por %p68, %p69
      %p71 = scmp.ne.s32.totalorder %s63, %s65
      %p72 = scmp.eq.s32.totalorder %s34, 1
      %p73 = por %p71, %p72
      %p74 = scmp.ne.s32.totalorder %s65, %s66
      %p75 = scmp.eq.s32.totalorder %s34, 0
      %p76 = por %p74, %p75
      %p77 = scmp.ne.s32.totalorder %s65, %s66
      %p78 = scmp.eq.s32.totalorder %s35, 1
      %p79 = por %p77, %p78
      %p81 = scmp.ne.s32.totalorder %s66, %s80
      %p82 = scmp.eq.s32.totalorder %s35, 0
      %p83 = por %p81, %p82
      %s85 = sadd.s32 %s84, 1
      %p88 = scmp.eq.s32.totalorder %s29, 1
      %p89 = scmp.ne.s32.totalorder %s84, %s86
      %p90 = scmp.eq.s32.totalorder %s29, 0
      %p91 = por %p89, %p90
      %p92 = scmp.ne.s32.totalorder %s84, %s86
      %p93 = scmp.eq.s32.totalorder %s34, 1
      %p94 = por %p92, %p93
      %p95 = scmp.ne.s32.totalorder %s86, %s87
      %p96 = scmp.eq.s32.totalorder %s34, 0
      %p97 = por %p95, %p96
      %p98 = scmp.ne.s32.totalorder %s86, %s87
      %p99 = scmp.eq.s32.totalorder %s35, 1
      %p100 = por %p98, %p99
      %p102 = scmp.ne.s32.totalorder %s87, %s101
      %p103 = scmp.eq.s32.totalorder %s35, 0
      %p104 = por %p102, %p103
      %s106 = sadd.s32 %s105, 1
      %p109 = scmp.eq.s32.totalorder %s29, 1
      %p110 = scmp.ne.s32.totalorder %s105, %s107
      %p111 = scmp.eq.s32.totalorder %s29, 0
      %p112 = por %p110, %p111
      %p113 = scmp.ne.s32.totalorder %s105, %s107
      %p114 = scmp.eq.s32.totalorder %s34, 1
      %p115 = por %p113, %p114
      %p116 = scmp.ne.s32.totalorder %s107, %s108
      %p117 = scmp.eq.s32.totalorder %s34, 0
      %p118 = por %p116, %p117
      %p119 = scmp.ne.s32.totalorder %s107, %s108
      %p120 = scmp.eq.s32.totalorder %s35, 1
      %p121 = por %p119, %p120
      %p123 = scmp.ne.s32.totalorder %s108, %s122
      %p124 = scmp.eq.s32.totalorder %s35, 0
      %p125 = por %p123, %p124
      %s127 = sadd.s32 %s126, 1
      %p130 = scmp.eq.s32.totalorder %s29, 1
      %p131 = scmp.ne.s32.totalorder %s126, %s128
      %p132 = scmp.eq.s32.totalorder %s29, 0
      %p133 = por %p131, %p132
      %p134 = scmp.ne.s32.totalorder %s126, %s128
      %p135 = scmp.eq.s32.totalorder %s34, 1
      %p136 = por %p134, %p135
      %p137 = scmp.ne.s32.totalorder %s128, %s129
      %p138 = scmp.eq.s32.totalorder %s34, 0
      %p139 = por %p137, %p138
      %p140 = scmp.ne.s32.totalorder %s128, %s129
      %p141 = scmp.eq.s32.totalorder %s35, 1
      %p142 = por %p140, %p141
      %p144 = scmp.ne.s32.totalorder %s129, %s143
      %p145 = scmp.eq.s32.totalorder %s35, 0
      %p146 = por %p144, %p145
      %s148 = sadd.s32 %s147, 1
      %p151 = scmp.eq.s32.totalorder %s29, 1
      %p152 = scmp.ne.s32.totalorder %s147, %s149
      %p153 = scmp.eq.s32.totalorder %s29, 0
      %p154 = por %p152, %p153
      %p155 = scmp.ne.s32.totalorder %s147, %s149
      %p156 = scmp.eq.s32.totalorder %s34, 1
      %p157 = por %p155, %p156
      %p158 = scmp.ne.s32.totalorder %s149, %s150
      %p159 = scmp.eq.s32.totalorder %s34, 0
      %p160 = por %p158, %p159
      %p161 = scmp.ne.s32.totalorder %s149, %s150
      %p162 = scmp.eq.s32.totalorder %s35, 1
      %p163 = por %p161, %p162
      %p165 = scmp.ne.s32.totalorder %s150, %s164
      %p166 = scmp.eq.s32.totalorder %s35, 0
      %p167 = por %p165, %p166
      %s169 = sadd.s32 %s168, 1
      %p172 = scmp.eq.s32.totalorder %s29, 1
      %p173 = scmp.ne.s32.totalorder %s168, %s170
      %p174 = scmp.eq.s32.totalorder %s29, 0
      %p175 = por %p173, %p174
      %p176 = scmp.ne.s32.totalorder %s168, %s170
      %p177 = scmp.eq.s32.totalorder %s34, 1
      %p178 = por %p176, %p177
      %p179 = scmp.ne.s32.totalorder %s170, %s171
      %p180 = scmp.eq.s32.totalorder %s34, 0
      %p181 = por %p179, %p180
      %p182 = scmp.ne.s32.totalorder %s170, %s171
      %p183 = scmp.eq.s32.totalorder %s35, 1
      %p184 = por %p182, %p183
      %p186 = scmp.ne.s32.totalorder %s171, %s185
      %p187 = scmp.eq.s32.totalorder %s35, 0
      %p188 = por %p186, %p187
      %s190 = sadd.s32 %s189, 1
      %p193 = scmp.eq.s32.totalorder %s29, 1
      %p194 = scmp.ne.s32.totalorder %s189, %s191
      %p195 = scmp.eq.s32.totalorder %s29, 0
      %p196 = por %p194, %p195
      %p197 = scmp.ne.s32.totalorder %s189, %s191
      %p198 = scmp.eq.s32.totalorder %s34, 1
      %p199 = por %p197, %p198
      %p200 = scmp.ne.s32.totalorder %s191, %s192
      %p201 = scmp.eq.s32.totalorder %s34, 0
      %p202 = por %p200, %p201
      %p203 = scmp.ne.s32.totalorder %s191, %s192
      %p204 = scmp.eq.s32.totalorder %s35, 1
      %p205 = por %p203, %p204
      %p207 = scmp.ne.s32.totalorder %s192, %s206
      %p208 = scmp.eq.s32.totalorder %s35, 0
      %p209 = por %p207, %p208
      %s211 = sadd.s32 %s210, 1
      %p214 = scmp.eq.s32.totalorder %s29, 1
      %p215 = scmp.ne.s32.totalorder %s210, %s212
      %p216 = scmp.eq.s32.totalorder %s29, 0
      %p217 = por %p215, %p216
      %p218 = scmp.ne.s32.totalorder %s210, %s212
      %p219 = scmp.eq.s32.totalorder %s34, 1
      %p220 = por %p218, %p219
      %p221 = scmp.ne.s32.totalorder %s212, %s213
      %p222 = scmp.eq.s32.totalorder %s34, 0
      %p223 = por %p221, %p222
      %p224 = scmp.ne.s32.totalorder %s212, %s213
      %p225 = scmp.eq.s32.totalorder %s35, 1
      %p226 = por %p224, %p225
      %p228 = scmp.ne.s32.totalorder %s213, %s227
      %p229 = scmp.eq.s32.totalorder %s35, 0
      %p230 = por %p228, %p229
      %s232 = sadd.s32 %s231, 1
      %p235 = scmp.eq.s32.totalorder %s29, 1
      %p236 = scmp.ne.s32.totalorder %s231, %s233
      %p237 = scmp.eq.s32.totalorder %s29, 0
      %p238 = por %p236, %p237
      %p239 = scmp.ne.s32.totalorder %s231, %s233
      %p240 = scmp.eq.s32.totalorder %s34, 1
      %p241 = por %p239, %p240
      %p242 = scmp.ne.s32.totalorder %s233, %s234
      %p243 = scmp.eq.s32.totalorder %s34, 0
      %p244 = por %p242, %p243
      %p245 = scmp.ne.s32.totalorder %s233, %s234
      %p246 = scmp.eq.s32.totalorder %s35, 1
      %p247 = por %p245, %p246
      %p249 = scmp.ne.s32.totalorder %s234, %s248
      %p250 = scmp.eq.s32.totalorder %s35, 0
      %p251 = por %p249, %p250
      %s253 = sadd.s32 %s252, 1
      %p256 = scmp.eq.s32.totalorder %s29, 1
      %p257 = scmp.ne.s32.totalorder %s252, %s254
      %p258 = scmp.eq.s32.totalorder %s29, 0
      %p259 = por %p257, %p258
      %p260 = scmp.ne.s32.totalorder %s252, %s254
      %p261 = scmp.eq.s32.totalorder %s34, 1
      %p262 = por %p260, %p261
      %p263 = scmp.ne.s32.totalorder %s254, %s255
      %p264 = scmp.eq.s32.totalorder %s34, 0
      %p265 = por %p263, %p264
      %p266 = scmp.ne.s32.totalorder %s254, %s255
      %p267 = scmp.eq.s32.totalorder %s35, 1
      %p268 = por %p266, %p267
      %p270 = scmp.ne.s32.totalorder %s255, %s269
      %p271 = scmp.eq.s32.totalorder %s35, 0
      %p272 = por %p270, %p271
      %s274 = sadd.s32 %s273, 1
      %p277 = scmp.eq.s32.totalorder %s29, 1
      %p278 = scmp.ne.s32.totalorder %s273, %s275
      %p279 = scmp.eq.s32.totalorder %s29, 0
      %p280 = por %p278, %p279
      %p281 = scmp.ne.s32.totalorder %s273, %s275
      %p282 = scmp.eq.s32.totalorder %s34, 1
      %p283 = por %p281, %p282
      %p284 = scmp.ne.s32.totalorder %s275, %s276
      %p285 = scmp.eq.s32.totalorder %s34, 0
      %p286 = por %p284, %p285
      %p287 = scmp.ne.s32.totalorder %s275, %s276
      %p288 = scmp.eq.s32.totalorder %s35, 1
      %p289 = por %p287, %p288
      %p291 = scmp.ne.s32.totalorder %s276, %s290
      %p292 = scmp.eq.s32.totalorder %s35, 0
      %p293 = por %p291, %p292
      %s295 = sadd.s32 %s294, 1
      %p298 = scmp.eq.s32.totalorder %s29, 1
      %p299 = scmp.ne.s32.totalorder %s294, %s296
      %p300 = scmp.eq.s32.totalorder %s29, 0
      %p301 = por %p299, %p300
      %p302 = scmp.ne.s32.totalorder %s294, %s296
      %p303 = scmp.eq.s32.totalorder %s34, 1
      %p304 = por %p302, %p303
      %p305 = scmp.ne.s32.totalorder %s296, %s297
      %p306 = scmp.eq.s32.totalorder %s34, 0
      %p307 = por %p305, %p306
      %p308 = scmp.ne.s32.totalorder %s296, %s297
      %p309 = scmp.eq.s32.totalorder %s35, 1
      %p310 = por %p308, %p309
      %p312 = scmp.ne.s32.totalorder %s297, %s311
      %p313 = scmp.eq.s32.totalorder %s35, 0
      %p314 = por %p312, %p313
      %s316 = sadd.s32 %s315, 1
      %p319 = scmp.eq.s32.totalorder %s29, 1
      %p320 = scmp.ne.s32.totalorder %s315, %s317
      %p321 = scmp.eq.s32.totalorder %s29, 0
      %p322 = por %p320, %p321
      %p323 = scmp.ne.s32.totalorder %s315, %s317
      %p324 = scmp.eq.s32.totalorder %s34, 1
      %p325 = por %p323, %p324
      %p326 = scmp.ne.s32.totalorder %s317, %s318
      %p327 = scmp.eq.s32.totalorder %s34, 0
      %p328 = por %p326, %p327
      %p329 = scmp.ne.s32.totalorder %s317, %s318
      %p330 = scmp.eq.s32.totalorder %s35, 1
      %p331 = por %p329, %p330
      %p333 = scmp.ne.s32.totalorder %s318, %s332
      %p334 = scmp.eq.s32.totalorder %s35, 0
      %p335 = por %p333, %p334
      %s337 = sadd.s32 %s336, 1
      %p340 = scmp.eq.s32.totalorder %s29, 1
      %p341 = scmp.ne.s32.totalorder %s336, %s338
      %p342 = scmp.eq.s32.totalorder %s29, 0
      %p343 = por %p341, %p342
      %p344 = scmp.ne.s32.totalorder %s336, %s338
      %p345 = scmp.eq.s32.totalorder %s34, 1
      %p346 = por %p344, %p345
      %p347 = scmp.ne.s32.totalorder %s338, %s339
      %p348 = scmp.eq.s32.totalorder %s34, 0
      %p349 = por %p347, %p348
      %p350 = scmp.ne.s32.totalorder %s338, %s339
      %p351 = scmp.eq.s32.totalorder %s35, 1
      %p352 = por %p350, %p351
      %p354 = scmp.ne.s32.totalorder %s339, %s353
      %p355 = scmp.eq.s32.totalorder %s35, 0
      %p356 = por %p354, %p355
      %s358 = sadd.s32 %s357, 1
      %p361 = scmp.eq.s32.totalorder %s29, 1
      %p362 = scmp.ne.s32.totalorder %s357, %s359
      %p363 = scmp.eq.s32.totalorder %s29, 0
      %p364 = por %p362, %p363
      %p365 = scmp.ne.s32.totalorder %s357, %s359
      %p366 = scmp.eq.s32.totalorder %s34, 1
      %p367 = por %p365, %p366
      %p368 = scmp.ne.s32.totalorder %s359, %s360
      %p369 = scmp.eq.s32.totalorder %s34, 0
      %p370 = por %p368, %p369
      %p371 = scmp.ne.s32.totalorder %s359, %s360
      %p372 = scmp.eq.s32.totalorder %s35, 1
      %p373 = por %p371, %p372
      %p375 = scmp.ne.s32.totalorder %s360, %s374
      %p376 = scmp.eq.s32.totalorder %s35, 0
      %p377 = por %p375, %p376
      %s379 = sadd.s32 %s378, 1
      %p382 = scmp.eq.s32.totalorder %s29, 1
      %p383 = scmp.ne.s32.totalorder %s378, %s380
      %p384 = scmp.eq.s32.totalorder %s29, 0
      %p385 = por %p383, %p384
      %p386 = scmp.ne.s32.totalorder %s378, %s380
      %p387 = scmp.eq.s32.totalorder %s34, 1
      %p388 = por %p386, %p387
      %p389 = scmp.ne.s32.totalorder %s380, %s381
      %p390 = scmp.eq.s32.totalorder %s34, 0
      %p391 = por %p389, %p390
      %p392 = scmp.ne.s32.totalorder %s380, %s381
      %p393 = scmp.eq.s32.totalorder %s35, 1
      %p394 = por %p392, %p393
      %p396 = scmp.ne.s32.totalorder %s381, %s395
      %p397 = scmp.eq.s32.totalorder %s35, 0
      %p398 = por %p396, %p397
      %s400 = sadd.s32 %s399, 1
      %p403 = scmp.eq.s32.totalorder %s29, 1
      %p404 = scmp.ne.s32.totalorder %s399, %s401
      %p405 = scmp.eq.s32.totalorder %s29, 0
      %p406 = por %p404, %p405
      %p407 = scmp.ne.s32.totalorder %s399, %s401
      %p408 = scmp.eq.s32.totalorder %s34, 1
      %p409 = por %p407, %p408
      %p410 = scmp.ne.s32.totalorder %s401, %s402
      %p411 = scmp.eq.s32.totalorder %s34, 0
      %p412 = por %p410, %p411
      %p413 = scmp.ne.s32.totalorder %s401, %s402
      %p414 = scmp.eq.s32.totalorder %s35, 1
      %p415 = por %p413, %p414
      %p417 = scmp.ne.s32.totalorder %s402, %s416
      %p418 = scmp.eq.s32.totalorder %s35, 0
      %p419 = por %p417, %p418
      %s420 = ssub.s32 %s29, %s36
      %p421 = scmp.eq.s32.totalorder %s420, 0
      %s423 = sadd.s32 %s422, 1
      %s424 = scalar_select %p421, %s422, %s423
      %p427 = pneg %p421
      %p428 = scmp.eq.s32.totalorder %s29, 1
      %p429 = por %p427, %p428
      %p430 = scmp.ne.s32.totalorder %s422, %s425
      %p431 = scmp.eq.s32.totalorder %s29, 0
      %p432 = por %p430, %p431
      %p433 = scmp.ne.s32.totalorder %s422, %s425
      %p434 = scmp.eq.s32.totalorder %s34, 1
      %p435 = por %p433, %p434
      %p436 = scmp.ne.s32.totalorder %s425, %s426
      %p437 = scmp.eq.s32.totalorder %s34, 0
      %p438 = por %p436, %p437
      %p439 = scmp.ne.s32.totalorder %s425, %s426
      %p440 = scmp.eq.s32.totalorder %s35, 1
      %p441 = por %p439, %p440
      %p443 = scmp.ne.s32.totalorder %s426, %s442
      %p444 = scmp.eq.s32.totalorder %s35, 0
      %p445 = por %p443, %p444
      %p446 = scmp.le.s32.totalorder 1, %s29
      %p447 = scmp.lt.s32.totalorder %s29, 3
      %p448 = pnand %p446, %p447
      %p449 = pneg %p448
      // Predicated region
      $region9: #{tpu_custom_call.1} parent=5 // pred_check
        _
      $region10: #{tpu_custom_call.1} parent=5 // pred_check_branch
        %451 = sbr.rel (%p448) target = $region12
      $region11: #{tpu_custom_call.1} parent=5 // pred_region
        %s452 = ssub.s32 %s29, 1
        // Predicated region
        $region13: #{tpu_custom_call.1} parent=11 // pred_check
          %p453 = pneg %p76
        $region14: #{tpu_custom_call.1} parent=11 // pred_check_branch
          %455 = sbr.rel (%p453) target = $region16
        $region15: #{tpu_custom_call.1} parent=11 // pred_region
          _
        $region16: #{tpu_custom_call.1} parent=11 // pred_fallthru
          _
        // Predicated region
        $region17: #{tpu_custom_call.1} parent=11 // pred_check
          %p456 = pneg %p97
        $region18: #{tpu_custom_call.1} parent=11 // pred_check_branch
          %458 = sbr.rel (%p456) target = $region20
        $region19: #{tpu_custom_call.1} parent=11 // pred_region
          _
        $region20: #{tpu_custom_call.1} parent=11 // pred_fallthru
          _
        // Predicated region
        $region21: #{tpu_custom_call.1} parent=11 // pred_check
          %p459 = pneg %p118
        $region22: #{tpu_custom_call.1} parent=11 // pred_check_branch
          %461 = sbr.rel (%p459) target = $region24
        $region23: #{tpu_custom_call.1} parent=11 // pred_region
          _
        $region24: #{tpu_custom_call.1} parent=11 // pred_fallthru
          _
        // Predicated region
        $region25: #{tpu_custom_call.1} parent=11 // pred_check
          %p462 = pneg %p139
        $region26: #{tpu_custom_call.1} parent=11 // pred_check_branch
          %464 = sbr.rel (%p462) target = $region28
        $region27: #{tpu_custom_call.1} parent=11 // pred_region
          _
        $region28: #{tpu_custom_call.1} parent=11 // pred_fallthru
          _
        // Predicated region
        $region29: #{tpu_custom_call.1} parent=11 // pred_check
          %p465 = pneg %p160
        $region30: #{tpu_custom_call.1} parent=11 // pred_check_branch
          %467 = sbr.rel (%p465) target = $region32
        $region31: #{tpu_custom_call.1} parent=11 // pred_region
          _
        $region32: #{tpu_custom_call.1} parent=11 // pred_fallthru
          _
        // Predicated region
        $region33: #{tpu_custom_call.1} parent=11 // pred_check
          %p468 = pneg %p181
        $region34: #{tpu_custom_call.1} parent=11 // pred_check_branch
          %470 = sbr.rel (%p468) target = $region36
        $region35: #{tpu_custom_call.1} parent=11 // pred_region
          _
        $region36: #{tpu_custom_call.1} parent=11 // pred_fallthru
          _
        // Predicated region
        $region37: #{tpu_custom_call.1} parent=11 // pred_check
          %p471 = pneg %p202
        $region38: #{tpu_custom_call.1} parent=11 // pred_check_branch
          %473 = sbr.rel (%p471) target = $region40
        $region39: #{tpu_custom_call.1} parent=11 // pred_region
          _
        $region40: #{tpu_custom_call.1} parent=11 // pred_fallthru
          _
        // Predicated region
        $region41: #{tpu_custom_call.1} parent=11 // pred_check
          %p474 = pneg %p223
        $region42: #{tpu_custom_call.1} parent=11 // pred_check_branch
          %476 = sbr.rel (%p474) target = $region44
        $region43: #{tpu_custom_call.1} parent=11 // pred_region
          _
        $region44: #{tpu_custom_call.1} parent=11 // pred_fallthru
          _
        // Predicated region
        $region45: #{tpu_custom_call.1} parent=11 // pred_check
          %p477 = pneg %p244
        $region46: #{tpu_custom_call.1} parent=11 // pred_check_branch
          %479 = sbr.rel (%p477) target = $region48
        $region47: #{tpu_custom_call.1} parent=11 // pred_region
          _
        $region48: #{tpu_custom_call.1} parent=11 // pred_fallthru
          _
        // Predicated region
        $region49: #{tpu_custom_call.1} parent=11 // pred_check
          %p480 = pneg %p265
        $region50: #{tpu_custom_call.1} parent=11 // pred_check_branch
          %482 = sbr.rel (%p480) target = $region52
        $region51: #{tpu_custom_call.1} parent=11 // pred_region
          _
        $region52: #{tpu_custom_call.1} parent=11 // pred_fallthru
          _
        // Predicated region
        $region53: #{tpu_custom_call.1} parent=11 // pred_check
          %p483 = pneg %p286
        $region54: #{tpu_custom_call.1} parent=11 // pred_check_branch
          %485 = sbr.rel (%p483) target = $region56
        $region55: #{tpu_custom_call.1} parent=11 // pred_region
          _
        $region56: #{tpu_custom_call.1} parent=11 // pred_fallthru
          _
        // Predicated region
        $region57: #{tpu_custom_call.1} parent=11 // pred_check
          %p486 = pneg %p307
        $region58: #{tpu_custom_call.1} parent=11 // pred_check_branch
          %488 = sbr.rel (%p486) target = $region60
        $region59: #{tpu_custom_call.1} parent=11 // pred_region
          _
        $region60: #{tpu_custom_call.1} parent=11 // pred_fallthru
          _
        // Predicated region
        $region61: #{tpu_custom_call.1} parent=11 // pred_check
          %p489 = pneg %p328
        $region62: #{tpu_custom_call.1} parent=11 // pred_check_branch
          %491 = sbr.rel (%p489) target = $region64
        $region63: #{tpu_custom_call.1} parent=11 // pred_region
          _
        $region64: #{tpu_custom_call.1} parent=11 // pred_fallthru
          _
        // Predicated region
        $region65: #{tpu_custom_call.1} parent=11 // pred_check
          %p492 = pneg %p349
        $region66: #{tpu_custom_call.1} parent=11 // pred_check_branch
          %494 = sbr.rel (%p492) target = $region68
        $region67: #{tpu_custom_call.1} parent=11 // pred_region
          _
        $region68: #{tpu_custom_call.1} parent=11 // pred_fallthru
          _
        // Predicated region
        $region69: #{tpu_custom_call.1} parent=11 // pred_check
          %p495 = pneg %p370
        $region70: #{tpu_custom_call.1} parent=11 // pred_check_branch
          %497 = sbr.rel (%p495) target = $region72
        $region71: #{tpu_custom_call.1} parent=11 // pred_region
          _
        $region72: #{tpu_custom_call.1} parent=11 // pred_fallthru
          _
        // Predicated region
        $region73: #{tpu_custom_call.1} parent=11 // pred_check
          %p498 = pneg %p391
        $region74: #{tpu_custom_call.1} parent=11 // pred_check_branch
          %500 = sbr.rel (%p498) target = $region76
        $region75: #{tpu_custom_call.1} parent=11 // pred_region
          _
        $region76: #{tpu_custom_call.1} parent=11 // pred_fallthru
          _
        // Predicated region
        $region77: #{tpu_custom_call.1} parent=11 // pred_check
          %p501 = pneg %p412
        $region78: #{tpu_custom_call.1} parent=11 // pred_check_branch
          %503 = sbr.rel (%p501) target = $region80
        $region79: #{tpu_custom_call.1} parent=11 // pred_region
          _
        $region80: #{tpu_custom_call.1} parent=11 // pred_fallthru
          _
      $region12: #{tpu_custom_call.1} parent=5 // pred_fallthru
        _
      %p504 = scmp.lt.s32.totalorder %s29, 2
      // Predicated region
      $region81: #{tpu_custom_call.1} parent=5 // pred_check
        %p505 = pneg %p504
      $region82: #{tpu_custom_call.1} parent=5 // pred_check_branch
        %507 = sbr.rel (%p505) target = $region84
      $region83: #{tpu_custom_call.1} parent=5 // pred_region
        // Predicated region
        $region85: #{tpu_custom_call.1} parent=83 // pred_check
          %p508 = pneg %p49
        $region86: #{tpu_custom_call.1} parent=83 // pred_check_branch
          %510 = sbr.rel (%p508) target = $region88
        $region87: #{tpu_custom_call.1} parent=83 // pred_region
          %p511 = scmp.lt.s32.totalorder %s29, 1
          %s512 = scalar_select %p511, %s29, 1
          %s513 = smul.addr %s512, 8
          %s514 = scalar_lea.vmem %s0, %s513
        $region88: #{tpu_custom_call.1} parent=83 // pred_fallthru
          _
      $region84: #{tpu_custom_call.1} parent=5 // pred_fallthru
        _
      %p515 = scmp.le.s32.totalorder 1, %s29
      %p516 = scmp.lt.s32.totalorder %s29, 3
      %p517 = pnand %p515, %p516
      %p518 = pneg %p517
      // Predicated region
      $region89: #{tpu_custom_call.1} parent=5 // pred_check
        _
      $region90: #{tpu_custom_call.1} parent=5 // pred_check_branch
        %520 = sbr.rel (%p517) target = $region92
      $region91: #{tpu_custom_call.1} parent=5 // pred_region
        %s521 = ssub.s32 %s29, 1
        %p522 = scmp.lt.s32.totalorder %s34, 1
        %s523 = scalar_select %p522, %s34, 1
        %s524 = smul.addr %s523, 8
        %s525 = scalar_lea.vmem %s0, %s524
        %p526 = pneg %p55
        %p527 = pneg %p52
        %p528 = pneg %p76
        %p529 = pneg %p73
        %p530 = pneg %p97
        %p531 = pneg %p94
        %p532 = pneg %p118
        %p533 = pneg %p115
        %p534 = pneg %p139
        %p535 = pneg %p136
        %p536 = pneg %p160
        %p537 = pneg %p157
        %p538 = pneg %p181
        %p539 = pneg %p178
        %p540 = pneg %p202
        %p541 = pneg %p199
        %p542 = pneg %p223
        %p543 = pneg %p220
        %p544 = pneg %p244
        %p545 = pneg %p241
        %p546 = pneg %p265
        %p547 = pneg %p262
        %p548 = pneg %p286
        %p549 = pneg %p283
        %p550 = pneg %p307
        %p551 = pneg %p304
        %p552 = pneg %p328
        %p553 = pneg %p325
        %p554 = pneg %p349
        %p555 = pneg %p346
        %p556 = pneg %p370
        %p557 = pneg %p367
        %p558 = pneg %p391
        %p559 = pneg %p388
        %p560 = pneg %p412
        %p561 = pneg %p409
        %p562 = pneg %p438
        %p563 = pneg %p435
        %s564 = sand.u32 %s425, 1
        %s565 = scalar_lea.sflag [#allocation4], %s564
        %s566 = sand.u32 %s425, 1
        %s567 = scalar_lea.vmem [#allocation3], %s566
        %p568 = scmp.lt.s32.totalorder %s34, 1
        %s569 = scalar_select %p568, %s34, 1
        %s570 = smul.addr %s569, 8
        %s571 = scalar_lea.vmem %s0, %s570
        %v573 = vlaneseq
        %v574 = vand.u32 %v573, 127
        %vm575 = vcmp.lt.s32.totalorder %v574, 0
        %v576 = vsub.s32 0, %v574
        %v577 = vsel %vm575, %v576, %v574
        %v578 = vmul.u32.u64.compose %v577, 3817748708
        %v579 = vextract.low.u32 %v578
        %v580 = vextract.high.u32 %v578
        %v581 = vshrl.u32 %v580, 4
        %v582 = vmul.u32 %v581, 18
        %v583 = vsub.s32 %v577, %v582
        %v584 = vsub.s32 0, %v583
        %v585 = vsel %vm575, %v584, %v583
        %vm586 = vcmp.ne.s32.totalorder %v585, 0
        %vm587 = vcmp.lt.s32.totalorder %v585, 0
        %vm588 = vmand %vm587, %vm586
        %v589 = vadd.s32 %v585, 18
        %v590 = vsel %vm588, %v589, %v585
        %vm591 = vcmp.ge.s32.totalorder %v590, 1
        %vm592 = vcmp.le.s32.totalorder %v590, 16
        %vm593 = vmand %vm591, %vm592
        %v594 = vld [vmem:[%s571] sm:$0xff]
        %v595 = vld [vmem:[%s1] sm:$0xff]
        %v596 = vld [vmem:[%s2] sm:$0xff]
        %v598 = vrot.slane %v594, 7
        %vm600 = vcmask 1047840
        %601 = vrot.lane.b32.xlu0 %v598, 36
        %v602 = vpop.permute.xlu0 %601
        %v603 = vsel %vm600, %v602, %v598
        %604 = vrot.lane.b32.xlu0 %v603, 36
        %v605 = vpop.permute.xlu0 %604
        %v606 = vsel %vm600, %v605, %v598
        %608 = vset.pattern.permute.xlu0 0
        %609 = vperm.xlu0 %608, %v595
        %v610 = vpop.permute.xlu0 %609
        %v612 = vlaneseq
        %v613 = vshrl.u32 %v612, 7
        %v614 = vsub.s32 0, %v613
        %v615 = vrot.slane %v606, %v614
        %v616 = vmul.f32 %v610, %v615
        %617 = vset.pattern.permute.xlu0 1
        %618 = vperm.xlu0 %617, %v595
        %v619 = vpop.permute.xlu0 %618
        %v621 = vlaneseq
        %v622 = vshrl.u32 %v621, 7
        %v623 = vsub.s32 0, %v622
        %v624 = vrot.slane %v594, %v623
        %v625 = vmul.f32 %v619, %v624
        %627 = vrot.lane.b32.xlu0 %v625, 35
        %v628 = vpop.permute.xlu0 %627
        %v630 = vadd.f32 %v616, %v628
        %631 = vset.pattern.permute.xlu0 2
        %632 = vperm.xlu0 %631, %v595
        %v633 = vpop.permute.xlu0 %632
        %v635 = vlaneseq
        %v636 = vshrl.u32 %v635, 7
        %v637 = vsub.s32 1, %v636
        %v638 = vrot.slane %v594, %v637
        %v639 = vmul.f32 %v633, %v638
        %641 = vrot.lane.b32.xlu0 %v639, 35
        %v642 = vpop.permute.xlu0 %641
        %v644 = vadd.f32 %v630, %v642
        %646 = vset.pattern.permute.xlu0 0
        %647 = vperm.xlu0 %646, %v596
        %v648 = vpop.permute.xlu0 %647
        %v650 = vadd.f32 %v644, %v648
        %v651 = vmul.f32 %v650, 0.2
        %v652 = vmax.f32 %v650, %v651
        %v653 = vsel %vm593, 1, 0
        %vm654 = vcmp.eq.s32.totalorder %v653, 1
        %656 = vrot.lane.b32.xlu0 %v652, 93
        %v657 = vpop.permute.xlu0 %656
        %v659 = vsel %vm654, %v657, 0.0
        %v660 = vmul.f32 %v610, %v624
        %v661 = vmul.f32 %v619, %v638
        %v662 = vadd.f32 %v660, %v661
        %v663 = vlaneseq
        %v664 = vshrl.u32 %v663, 7
        %v665 = vsub.s32 2, %v664
        %v666 = vrot.slane %v594, %v665
        %v667 = vmul.f32 %v633, %v666
        %v668 = vadd.f32 %v662, %v667
        %v669 = vadd.f32 %v668, %v648
        %v670 = vmul.f32 %v669, 0.2
        %v671 = vmax.f32 %v669, %v670
        %v672 = vsel %vm654, %v671, 0.0
        %v673 = vmul.f32 %v610, %v638
        %v674 = vmul.f32 %v619, %v666
        %v675 = vadd.f32 %v673, %v674
        %v676 = vlaneseq
        %v677 = vshrl.u32 %v676, 7
        %v678 = vsub.s32 3, %v677
        %v679 = vrot.slane %v594, %v678
        %v680 = vmul.f32 %v633, %v679
        %v681 = vadd.f32 %v675, %v680
        %v682 = vadd.f32 %v681, %v648
        %v683 = vmul.f32 %v682, 0.2
        %v684 = vmax.f32 %v682, %v683
        %v685 = vsel %vm654, %v684, 0.0
        %v686 = vmul.f32 %v610, %v666
        %v687 = vmul.f32 %v619, %v679
        %v688 = vadd.f32 %v686, %v687
        %v689 = vlaneseq
        %v690 = vshrl.u32 %v689, 7
        %v691 = vsub.s32 4, %v690
        %v692 = vrot.slane %v594, %v691
        %v693 = vmul.f32 %v633, %v692
        %v694 = vadd.f32 %v688, %v693
        %v695 = vadd.f32 %v694, %v648
        %v696 = vmul.f32 %v695, 0.2
        %v697 = vmax.f32 %v695, %v696
        %v698 = vsel %vm654, %v697, 0.0
        %v699 = vmul.f32 %v610, %v679
        %v700 = vmul.f32 %v619, %v692
        %v701 = vadd.f32 %v699, %v700
        %v702 = vlaneseq
        %v703 = vshrl.u32 %v702, 7
        %v704 = vsub.s32 5, %v703
        %v705 = vrot.slane %v594, %v704
        %v706 = vmul.f32 %v633, %v705
        %v707 = vadd.f32 %v701, %v706
        %v708 = vadd.f32 %v707, %v648
        %v709 = vmul.f32 %v708, 0.2
        %v710 = vmax.f32 %v708, %v709
        %v711 = vsel %vm654, %v710, 0.0
        %v712 = vmul.f32 %v610, %v692
        %v713 = vmul.f32 %v619, %v705
        %v714 = vadd.f32 %v712, %v713
        %v715 = vlaneseq
        %v716 = vshrl.u32 %v715, 7
        %v717 = vsub.s32 6, %v716
        %v718 = vrot.slane %v594, %v717
        %v719 = vmul.f32 %v633, %v718
        %v720 = vadd.f32 %v714, %v719
        %v721 = vadd.f32 %v720, %v648
        %v722 = vmul.f32 %v721, 0.2
        %v723 = vmax.f32 %v721, %v722
        %v724 = vsel %vm654, %v723, 0.0
        %v725 = vmul.f32 %v610, %v705
        %v726 = vmul.f32 %v619, %v718
        %v727 = vadd.f32 %v725, %v726
        %v728 = vlaneseq
        %v729 = vshrl.u32 %v728, 7
        %v730 = vsub.s32 7, %v729
        %v731 = vrot.slane %v594, %v730
        %v732 = vmul.f32 %v633, %v731
        %v733 = vadd.f32 %v727, %v732
        %v734 = vadd.f32 %v733, %v648
        %v735 = vmul.f32 %v734, 0.2
        %v736 = vmax.f32 %v734, %v735
        %v737 = vsel %vm654, %v736, 0.0
        %v738 = vmul.f32 %v610, %v718
        %v739 = vmul.f32 %v619, %v731
        %v740 = vadd.f32 %v738, %v739
        %741 = vrot.lane.b32.xlu0 %v594, 36
        %v742 = vpop.permute.xlu0 %741
        %v743 = vsel %vm600, %v742, %v594
        %744 = vrot.lane.b32.xlu0 %v743, 36
        %v745 = vpop.permute.xlu0 %744
        %v746 = vsel %vm600, %v745, %v594
        %v747 = vlaneseq
        %v748 = vshrl.u32 %v747, 7
        %v749 = vsub.s32 0, %v748
        %v750 = vrot.slane %v746, %v749
        %v751 = vmul.f32 %v633, %v750
        %753 = vrot.lane.b32.xlu0 %v751, 127
        %v754 = vpop.permute.xlu0 %753
        %v756 = vadd.f32 %v740, %v754
        %v757 = vadd.f32 %v756, %v648
        %v758 = vmul.f32 %v757, 0.2
        %v759 = vmax.f32 %v757, %v758
        %v760 = vsel %vm654, %v759, 0.0
        %v761 = vld [vmem:[%s3] sm:$0xf]
        %v762 = vld [vmem:[%s4] sm:$0xff]
        %763 = vrot.lane.b32.xlu0 %v760, 36
        %v764 = vpop.permute.xlu0 %763
        %v765 = vsel %vm600, %v764, %v760
        %766 = vrot.lane.b32.xlu0 %v765, 36
        %v767 = vpop.permute.xlu0 %766
        %v768 = vsel %vm600, %v767, %v760
        %770 = vrot.lane.b32.xlu0 %v659, 35
        %v771 = vpop.permute.xlu0 %770
        %774 = vrot.lane.b32.xlu0 %v672, 35
        %v775 = vpop.permute.xlu0 %774
        %v777 = vpack.c.bf16 %v771, %v768
        %v778 = vpack.c.bf16 %v775, %v775
        %780 = vset.pattern.permute.xlu0 0
        %781 = vperm.xlu0 %780, %v762
        %v782 = vpop.permute.xlu0 %781
        %786 = vrot.lane.b32.xlu0 %v777, 93
        %v787 = vpop.permute.xlu0 %786
        %788 = vrot.lane.b32.xlu0 %v778, 93
        %v789 = vpop.permute.xlu0 %788
        %vm791 = vcmask 195584
        %v793 = vsel %vm791, %v761, 0
        %vm795 = vcmask 1043456
        %v797 = vsel %vm795, %v789, 0
        %799 = vmatprep.subr.bf16.mxu0 0
        %800 = vmatpush1.bf16.msra.mxu0 0
        %801 = vmatprep.subr.bf16.mxu0 0
        %802 = vmatpush1.bf16.msra.mxu0 0
        %803 = vmatprep.subr.bf16.mxu0 0
        %804 = vmatpush1.bf16.msra.mxu0 0
        %805 = vmatprep.subr.bf16.mxu0 0
        %806 = vmatpush1.bf16.msra.mxu0 0
        %807 = vmatprep.subr.bf16.mxu0 0
        %808 = vmatpush1.bf16.msra.mxu0 0
        %809 = vmatprep.subr.bf16.mxu0 0
        %810 = vmatpush1.bf16.msra.mxu0 0
        %811 = vmatprep.subr.bf16.mxu0 0
        %812 = vmatpush1.bf16.msra.mxu0 %v797
        %813 = vmatprep.subr.bf16.mxu0 0
        %814 = vmatpush1.bf16.msra.mxu0 %v787
        %815 = vmatprep.subr.bf16.mxu0 0
        %816 = vmatpush2.bf16.msra.mxu0 0
        %817 = vmatprep.subr.bf16.mxu0 0
        %818 = vmatpush2.bf16.msra.mxu0 0
        %819 = vmatprep.subr.bf16.mxu0 0
        %820 = vmatpush2.bf16.msra.mxu0 0
        %821 = vmatprep.subr.bf16.mxu0 0
        %822 = vmatpush2.bf16.msra.mxu0 0
        %823 = vmatprep.subr.bf16.mxu0 0
        %824 = vmatpush2.bf16.msra.mxu0 0
        %825 = vmatprep.subr.bf16.mxu0 0
        %826 = vmatpush2.bf16.msra.mxu0 0
        %827 = vmatprep.subr.bf16.mxu0 0
        %828 = vmatpush2.bf16.msra.mxu0 0
        %829 = vmatprep.subr.bf16.mxu0 0
        %830 = vmatpush2.bf16.msra.mxu0 0
        %831 = vmatprep.mubr.bf16.mxu0 0
        %832 = vmatmul.mubr.bf16.gmra.mxu0 %v793
        %v833 = vpop.f32.mrf.mxu0
        %v834 = vadd.f32 %v782, %v833
        %v835 = vpop.f32.mrf.mxu0
        %v836 = vpop.f32.mrf.mxu0
        %v837 = vpop.f32.mrf.mxu0
        %838 = vdwg.mxu0
        %v839 = vmul.f32 %v834, 0.2
        %v840 = vmax.f32 %v834, %v839
        %v841 = vsel %vm654, %v840, 0.0
        %v842 = vpack.c.bf16 %v685, %v672
        %v843 = vpack.c.bf16 %v698, %v698
        %v845 = vsel %vm795, %v843, 0
        %847 = vmatprep.subr.bf16.mxu0 0
        %848 = vmatpush1.bf16.msra.mxu0 0
        %849 = vmatprep.subr.bf16.mxu0 0
        %850 = vmatpush1.bf16.msra.mxu0 0
        %851 = vmatprep.subr.bf16.mxu0 0
        %852 = vmatpush1.bf16.msra.mxu0 0
        %853 = vmatprep.subr.bf16.mxu0 0
        %854 = vmatpush1.bf16.msra.mxu0 0
        %855 = vmatprep.subr.bf16.mxu0 0
        %856 = vmatpush1.bf16.msra.mxu0 0
        %857 = vmatprep.subr.bf16.mxu0 0
        %858 = vmatpush1.bf16.msra.mxu0 0
        %859 = vmatprep.subr.bf16.mxu0 0
        %860 = vmatpush1.bf16.msra.mxu0 %v845
        %861 = vmatprep.subr.bf16.mxu0 0
        %862 = vmatpush1.bf16.msra.mxu0 %v842
        %863 = vmatprep.subr.bf16.mxu0 0
        %864 = vmatpush2.bf16.msra.mxu0 0
        %865 = vmatprep.subr.bf16.mxu0 0
        %866 = vmatpush2.bf16.msra.mxu0 0
        %867 = vmatprep.subr.bf16.mxu0 0
        %868 = vmatpush2.bf16.msra.mxu0 0
        %869 = vmatprep.subr.bf16.mxu0 0
        %870 = vmatpush2.bf16.msra.mxu0 0
        %871 = vmatprep.subr.bf16.mxu0 0
        %872 = vmatpush2.bf16.msra.mxu0 0
        %873 = vmatprep.subr.bf16.mxu0 0
        %874 = vmatpush2.bf16.msra.mxu0 0
        %875 = vmatprep.subr.bf16.mxu0 0
        %876 = vmatpush2.bf16.msra.mxu0 0
        %877 = vmatprep.subr.bf16.mxu0 0
        %878 = vmatpush2.bf16.msra.mxu0 0
        %879 = vmatprep.mubr.bf16.mxu0 0
        %880 = vmatmul.mubr.bf16.gmra.mxu0 %v793
        %v881 = vpop.f32.mrf.mxu0
        %v882 = vadd.f32 %v782, %v881
        %v883 = vpop.f32.mrf.mxu0
        %v884 = vpop.f32.mrf.mxu0
        %v885 = vpop.f32.mrf.mxu0
        %886 = vdwg.mxu0
        %v887 = vmul.f32 %v882, 0.2
        %v888 = vmax.f32 %v882, %v887
        %v889 = vsel %vm654, %v888, 0.0
        %v890 = vpack.c.bf16 %v711, %v698
        %v891 = vpack.c.bf16 %v724, %v724
        %v893 = vsel %vm795, %v891, 0
        %895 = vmatprep.subr.bf16.mxu0 0
        %896 = vmatpush1.bf16.msra.mxu0 0
        %897 = vmatprep.subr.bf16.mxu0 0
        %898 = vmatpush1.bf16.msra.mxu0 0
        %899 = vmatprep.subr.bf16.mxu0 0
        %900 = vmatpush1.bf16.msra.mxu0 0
        %901 = vmatprep.subr.bf16.mxu0 0
        %902 = vmatpush1.bf16.msra.mxu0 0
        %903 = vmatprep.subr.bf16.mxu0 0
        %904 = vmatpush1.bf16.msra.mxu0 0
        %905 = vmatprep.subr.bf16.mxu0 0
        %906 = vmatpush1.bf16.msra.mxu0 0
        %907 = vmatprep.subr.bf16.mxu0 0
        %908 = vmatpush1.bf16.msra.mxu0 %v893
        %909 = vmatprep.subr.bf16.mxu0 0
        %910 = vmatpush1.bf16.msra.mxu0 %v890
        %911 = vmatprep.subr.bf16.mxu0 0
        %912 = vmatpush2.bf16.msra.mxu0 0
        %913 = vmatprep.subr.bf16.mxu0 0
        %914 = vmatpush2.bf16.msra.mxu0 0
        %915 = vmatprep.subr.bf16.mxu0 0
        %916 = vmatpush2.bf16.msra.mxu0 0
        %917 = vmatprep.subr.bf16.mxu0 0
        %918 = vmatpush2.bf16.msra.mxu0 0
        %919 = vmatprep.subr.bf16.mxu0 0
        %920 = vmatpush2.bf16.msra.mxu0 0
        %921 = vmatprep.subr.bf16.mxu0 0
        %922 = vmatpush2.bf16.msra.mxu0 0
        %923 = vmatprep.subr.bf16.mxu0 0
        %924 = vmatpush2.bf16.msra.mxu0 0
        %925 = vmatprep.subr.bf16.mxu0 0
        %926 = vmatpush2.bf16.msra.mxu0 0
        %927 = vmatprep.mubr.bf16.mxu0 0
        %928 = vmatmul.mubr.bf16.gmra.mxu0 %v793
        %v929 = vpop.f32.mrf.mxu0
        %v930 = vadd.f32 %v782, %v929
        %v931 = vpop.f32.mrf.mxu0
        %v932 = vpop.f32.mrf.mxu0
        %v933 = vpop.f32.mrf.mxu0
        %934 = vdwg.mxu0
        %v935 = vmul.f32 %v930, 0.2
        %v936 = vmax.f32 %v930, %v935
        %v937 = vsel %vm654, %v936, 0.0
        %v938 = vpack.c.bf16 %v737, %v724
        %v939 = vpack.c.bf16 %v760, %v760
        %v941 = vsel %vm795, %v939, 0
        %943 = vmatprep.subr.bf16.mxu0 0
        %944 = vmatpush1.bf16.msra.mxu0 0
        %945 = vmatprep.subr.bf16.mxu0 0
        %946 = vmatpush1.bf16.msra.mxu0 0
        %947 = vmatprep.subr.bf16.mxu0 0
        %948 = vmatpush1.bf16.msra.mxu0 0
        %949 = vmatprep.subr.bf16.mxu0 0
        %950 = vmatpush1.bf16.msra.mxu0 0
        %951 = vmatprep.subr.bf16.mxu0 0
        %952 = vmatpush1.bf16.msra.mxu0 0
        %953 = vmatprep.subr.bf16.mxu0 0
        %954 = vmatpush1.bf16.msra.mxu0 0
        %955 = vmatprep.subr.bf16.mxu0 0
        %956 = vmatpush1.bf16.msra.mxu0 %v941
        %957 = vmatprep.subr.bf16.mxu0 0
        %958 = vmatpush1.bf16.msra.mxu0 %v938
        %959 = vmatprep.subr.bf16.mxu0 0
        %960 = vmatpush2.bf16.msra.mxu0 0
        %961 = vmatprep.subr.bf16.mxu0 0
        %962 = vmatpush2.bf16.msra.mxu0 0
        %963 = vmatprep.subr.bf16.mxu0 0
        %964 = vmatpush2.bf16.msra.mxu0 0
        %965 = vmatprep.subr.bf16.mxu0 0
        %966 = vmatpush2.bf16.msra.mxu0 0
        %967 = vmatprep.subr.bf16.mxu0 0
        %968 = vmatpush2.bf16.msra.mxu0 0
        %969 = vmatprep.subr.bf16.mxu0 0
        %970 = vmatpush2.bf16.msra.mxu0 0
        %971 = vmatprep.subr.bf16.mxu0 0
        %972 = vmatpush2.bf16.msra.mxu0 0
        %973 = vmatprep.subr.bf16.mxu0 0
        %974 = vmatpush2.bf16.msra.mxu0 0
        %975 = vmatprep.mubr.bf16.mxu0 0
        %976 = vmatmul.mubr.bf16.gmra.mxu0 %v793
        %v977 = vpop.f32.mrf.mxu0
        %v978 = vadd.f32 %v782, %v977
        %v979 = vpop.f32.mrf.mxu0
        %v980 = vpop.f32.mrf.mxu0
        %v981 = vpop.f32.mrf.mxu0
        %982 = vdwg.mxu0
        %v983 = vmul.f32 %v978, 0.2
        %v984 = vmax.f32 %v978, %v983
        %v985 = vsel %vm654, %v984, 0.0
        %v986 = vld [vmem:[%s5] sm:$0xf]
        %v987 = vld [vmem:[%s5 + $0x4] sm:$0xf]
        %v988 = vld [vmem:[%s6] sm:$0xff]
        %v989 = vld [vmem:[%s6 + $0x8] sm:$0xff]
        %990 = vrot.lane.b32.xlu0 %v985, 36
        %v991 = vpop.permute.xlu0 %990
        %v992 = vsel %vm600, %v991, %v985
        %993 = vrot.lane.b32.xlu0 %v992, 36
        %v994 = vpop.permute.xlu0 %993
        %v995 = vsel %vm600, %v994, %v985
        %997 = vrot.lane.b32.xlu0 %v841, 35
        %v998 = vpop.permute.xlu0 %997
        %1001 = vrot.lane.b32.xlu0 %v889, 35
        %v1002 = vpop.permute.xlu0 %1001
        %v1004 = vpack.c.bf16 %v998, %v995
        %v1005 = vpack.c.bf16 %v1002, %v1002
        %1007 = vset.pattern.permute.xlu0 0
        %1008 = vperm.xlu0 %1007, %v988
        %v1009 = vpop.permute.xlu0 %1008
        %1012 = vset.pattern.permute.xlu0 0
        %1013 = vperm.xlu0 %1012, %v989
        %v1014 = vpop.permute.xlu0 %1013
        %v1018 = vunpack.c.l.b16 %v986
        %v1019 = vunpack.c.l.b16 %v987
        %v1020 = vpack.c.b16 %v1019, %v1018
        %1023 = vrot.lane.b32.xlu0 %v1004, 93
        %v1024 = vpop.permute.xlu0 %1023
        %1025 = vrot.lane.b32.xlu0 %v1005, 93
        %v1026 = vpop.permute.xlu0 %1025
        %v1029 = vsel %vm791, %v1020, 0
        %v1032 = vsel %vm795, %v1026, 0
        %1034 = vmatprep.subr.bf16.mxu0 0
        %1035 = vmatpush1.bf16.msra.mxu0 0
        %1036 = vmatprep.subr.bf16.mxu0 0
        %1037 = vmatpush1.bf16.msra.mxu0 0
        %1038 = vmatprep.subr.bf16.mxu0 0
        %1039 = vmatpush1.bf16.msra.mxu0 0
        %1040 = vmatprep.subr.bf16.mxu0 0
        %1041 = vmatpush1.bf16.msra.mxu0 0
        %1042 = vmatprep.subr.bf16.mxu0 0
        %1043 = vmatpush1.bf16.msra.mxu0 0
        %1044 = vmatprep.subr.bf16.mxu0 0
        %1045 = vmatpush1.bf16.msra.mxu0 0
        %1046 = vmatprep.subr.bf16.mxu0 0
        %1047 = vmatpush1.bf16.msra.mxu0 %v1032
        %1048 = vmatprep.subr.bf16.mxu0 0
        %1049 = vmatpush1.bf16.msra.mxu0 %v1024
        %1050 = vmatprep.subr.bf16.mxu0 0
        %1051 = vmatpush2.bf16.msra.mxu0 0
        %1052 = vmatprep.subr.bf16.mxu0 0
        %1053 = vmatpush2.bf16.msra.mxu0 0
        %1054 = vmatprep.subr.bf16.mxu0 0
        %1055 = vmatpush2.bf16.msra.mxu0 0
        %1056 = vmatprep.subr.bf16.mxu0 0
        %1057 = vmatpush2.bf16.msra.mxu0 0
        %1058 = vmatprep.subr.bf16.mxu0 0
        %1059 = vmatpush2.bf16.msra.mxu0 0
        %1060 = vmatprep.subr.bf16.mxu0 0
        %1061 = vmatpush2.bf16.msra.mxu0 0
        %1062 = vmatprep.subr.bf16.mxu0 0
        %1063 = vmatpush2.bf16.msra.mxu0 0
        %1064 = vmatprep.subr.bf16.mxu0 0
        %1065 = vmatpush2.bf16.msra.mxu0 0
        %1066 = vmatprep.mubr.bf16.mxu0 0
        %1067 = vmatmul.mubr.bf16.gmra.mxu0 %v1029
        %v1068 = vpop.f32.mrf.mxu0
        %v1069 = vadd.f32 %v1009, %v1068
        %v1070 = vpop.f32.mrf.mxu0
        %v1071 = vpop.f32.mrf.mxu0
        %v1072 = vadd.f32 %v1014, %v1071
        %v1073 = vpop.f32.mrf.mxu0
        %1074 = vdwg.mxu0
        %v1075 = vmul.f32 %v1069, 0.2
        %v1076 = vmul.f32 %v1072, 0.2
        %v1077 = vmax.f32 %v1069, %v1075
        %v1078 = vmax.f32 %v1072, %v1076
        %v1079 = vsel %vm654, %v1077, 0.0
        %v1080 = vsel %vm654, %v1078, 0.0
        %v1081 = vpack.c.bf16 %v889, %v841
        %v1082 = vpack.c.bf16 %v937, %v937
        %v1084 = vsel %vm795, %v1082, 0
        %1086 = vmatprep.subr.bf16.mxu0 0
        %1087 = vmatpush1.bf16.msra.mxu0 0
        %1088 = vmatprep.subr.bf16.mxu0 0
        %1089 = vmatpush1.bf16.msra.mxu0 0
        %1090 = vmatprep.subr.bf16.mxu0 0
        %1091 = vmatpush1.bf16.msra.mxu0 0
        %1092 = vmatprep.subr.bf16.mxu0 0
        %1093 = vmatpush1.bf16.msra.mxu0 0
        %1094 = vmatprep.subr.bf16.mxu0 0
        %1095 = vmatpush1.bf16.msra.mxu0 0
        %1096 = vmatprep.subr.bf16.mxu0 0
        %1097 = vmatpush1.bf16.msra.mxu0 0
        %1098 = vmatprep.subr.bf16.mxu0 0
        %1099 = vmatpush1.bf16.msra.mxu0 %v1084
        %1100 = vmatprep.subr.bf16.mxu0 0
        %1101 = vmatpush1.bf16.msra.mxu0 %v1081
        %1102 = vmatprep.subr.bf16.mxu0 0
        %1103 = vmatpush2.bf16.msra.mxu0 0
        %1104 = vmatprep.subr.bf16.mxu0 0
        %1105 = vmatpush2.bf16.msra.mxu0 0
        %1106 = vmatprep.subr.bf16.mxu0 0
        %1107 = vmatpush2.bf16.msra.mxu0 0
        %1108 = vmatprep.subr.bf16.mxu0 0
        %1109 = vmatpush2.bf16.msra.mxu0 0
        %1110 = vmatprep.subr.bf16.mxu0 0
        %1111 = vmatpush2.bf16.msra.mxu0 0
        %1112 = vmatprep.subr.bf16.mxu0 0
        %1113 = vmatpush2.bf16.msra.mxu0 0
        %1114 = vmatprep.subr.bf16.mxu0 0
        %1115 = vmatpush2.bf16.msra.mxu0 0
        %1116 = vmatprep.subr.bf16.mxu0 0
        %1117 = vmatpush2.bf16.msra.mxu0 0
        %1118 = vmatprep.mubr.bf16.mxu0 0
        %1119 = vmatmul.mubr.bf16.gmra.mxu0 %v1029
        %v1120 = vpop.f32.mrf.mxu0
        %v1121 = vadd.f32 %v1009, %v1120
        %v1122 = vpop.f32.mrf.mxu0
        %v1123 = vpop.f32.mrf.mxu0
        %v1124 = vadd.f32 %v1014, %v1123
        %v1125 = vpop.f32.mrf.mxu0
        %1126 = vdwg.mxu0
        %v1127 = vmul.f32 %v1121, 0.2
        %v1128 = vmul.f32 %v1124, 0.2
        %v1129 = vmax.f32 %v1121, %v1127
        %v1130 = vmax.f32 %v1124, %v1128
        %v1131 = vsel %vm654, %v1129, 0.0
        %v1132 = vsel %vm654, %v1130, 0.0
        %v1133 = vpack.c.bf16 %v937, %v889
        %v1134 = vpack.c.bf16 %v985, %v985
        %v1136 = vsel %vm795, %v1134, 0
        %1138 = vmatprep.subr.bf16.mxu0 0
        %1139 = vmatpush1.bf16.msra.mxu0 0
        %1140 = vmatprep.subr.bf16.mxu0 0
        %1141 = vmatpush1.bf16.msra.mxu0 0
        %1142 = vmatprep.subr.bf16.mxu0 0
        %1143 = vmatpush1.bf16.msra.mxu0 0
        %1144 = vmatprep.subr.bf16.mxu0 0
        %1145 = vmatpush1.bf16.msra.mxu0 0
        %1146 = vmatprep.subr.bf16.mxu0 0
        %1147 = vmatpush1.bf16.msra.mxu0 0
        %1148 = vmatprep.subr.bf16.mxu0 0
        %1149 = vmatpush1.bf16.msra.mxu0 0
        %1150 = vmatprep.subr.bf16.mxu0 0
        %1151 = vmatpush1.bf16.msra.mxu0 %v1136
        %1152 = vmatprep.subr.bf16.mxu0 0
        %1153 = vmatpush1.bf16.msra.mxu0 %v1133
        %1154 = vmatprep.subr.bf16.mxu0 0
        %1155 = vmatpush2.bf16.msra.mxu0 0
        %1156 = vmatprep.subr.bf16.mxu0 0
        %1157 = vmatpush2.bf16.msra.mxu0 0
        %1158 = vmatprep.subr.bf16.mxu0 0
        %1159 = vmatpush2.bf16.msra.mxu0 0
        %1160 = vmatprep.subr.bf16.mxu0 0
        %1161 = vmatpush2.bf16.msra.mxu0 0
        %1162 = vmatprep.subr.bf16.mxu0 0
        %1163 = vmatpush2.bf16.msra.mxu0 0
        %1164 = vmatprep.subr.bf16.mxu0 0
        %1165 = vmatpush2.bf16.msra.mxu0 0
        %1166 = vmatprep.subr.bf16.mxu0 0
        %1167 = vmatpush2.bf16.msra.mxu0 0
        %1168 = vmatprep.subr.bf16.mxu0 0
        %1169 = vmatpush2.bf16.msra.mxu0 0
        %1170 = vmatprep.mubr.bf16.mxu0 0
        %1171 = vmatmul.mubr.bf16.gmra.mxu0 %v1029
        %v1172 = vpop.f32.mrf.mxu0
        %v1173 = vadd.f32 %v1009, %v1172
        %v1174 = vpop.f32.mrf.mxu0
        %v1175 = vpop.f32.mrf.mxu0
        %v1176 = vadd.f32 %v1014, %v1175
        %v1177 = vpop.f32.mrf.mxu0
        %1178 = vdwg.mxu0
        %v1179 = vmul.f32 %v1173, 0.2
        %v1180 = vmul.f32 %v1176, 0.2
        %v1181 = vmax.f32 %v1173, %v1179
        %v1182 = vmax.f32 %v1176, %v1180
        %v1183 = vsel %vm654, %v1181, 0.0
        %v1184 = vsel %vm654, %v1182, 0.0
        %1185 = vrot.lane.b32.xlu0 %v841, 36
        %v1186 = vpop.permute.xlu0 %1185
        %v1187 = vsel %vm600, %v1186, %v841
        %1188 = vrot.lane.b32.xlu0 %v1187, 36
        %v1189 = vpop.permute.xlu0 %1188
        %v1190 = vsel %vm600, %v1189, %v841
        %1192 = vrot.lane.b32.xlu0 %v1190, 127
        %v1193 = vpop.permute.xlu0 %1192
        %v1195 = vpack.c.bf16 %v985, %v937
        %v1196 = vpack.c.bf16 %v1193, %v1193
        %v1198 = vsel %vm795, %v1196, 0
        %1200 = vmatprep.subr.bf16.mxu0 0
        %1201 = vmatpush1.bf16.msra.mxu0 0
        %1202 = vmatprep.subr.bf16.mxu0 0
        %1203 = vmatpush1.bf16.msra.mxu0 0
        %1204 = vmatprep.subr.bf16.mxu0 0
        %1205 = vmatpush1.bf16.msra.mxu0 0
        %1206 = vmatprep.subr.bf16.mxu0 0
        %1207 = vmatpush1.bf16.msra.mxu0 0
        %1208 = vmatprep.subr.bf16.mxu0 0
        %1209 = vmatpush1.bf16.msra.mxu0 0
        %1210 = vmatprep.subr.bf16.mxu0 0
        %1211 = vmatpush1.bf16.msra.mxu0 0
        %1212 = vmatprep.subr.bf16.mxu0 0
        %1213 = vmatpush1.bf16.msra.mxu0 %v1198
        %1214 = vmatprep.subr.bf16.mxu0 0
        %1215 = vmatpush1.bf16.msra.mxu0 %v1195
        %1216 = vmatprep.subr.bf16.mxu0 0
        %1217 = vmatpush2.bf16.msra.mxu0 0
        %1218 = vmatprep.subr.bf16.mxu0 0
        %1219 = vmatpush2.bf16.msra.mxu0 0
        %1220 = vmatprep.subr.bf16.mxu0 0
        %1221 = vmatpush2.bf16.msra.mxu0 0
        %1222 = vmatprep.subr.bf16.mxu0 0
        %1223 = vmatpush2.bf16.msra.mxu0 0
        %1224 = vmatprep.subr.bf16.mxu0 0
        %1225 = vmatpush2.bf16.msra.mxu0 0
        %1226 = vmatprep.subr.bf16.mxu0 0
        %1227 = vmatpush2.bf16.msra.mxu0 0
        %1228 = vmatprep.subr.bf16.mxu0 0
        %1229 = vmatpush2.bf16.msra.mxu0 0
        %1230 = vmatprep.subr.bf16.mxu0 0
        %1231 = vmatpush2.bf16.msra.mxu0 0
        %1232 = vmatprep.mubr.bf16.mxu0 0
        %1233 = vmatmul.mubr.bf16.gmra.mxu0 %v1029
        %v1234 = vpop.f32.mrf.mxu0
        %v1235 = vadd.f32 %v1009, %v1234
        %v1236 = vpop.f32.mrf.mxu0
        %v1237 = vpop.f32.mrf.mxu0
        %v1238 = vadd.f32 %v1014, %v1237
        %v1239 = vpop.f32.mrf.mxu0
        %1240 = vdwg.mxu0
        %v1241 = vmul.f32 %v1235, 0.2
        %v1242 = vmul.f32 %v1238, 0.2
        %v1243 = vmax.f32 %v1235, %v1241
        %v1244 = vmax.f32 %v1238, %v1242
        %v1245 = vsel %vm654, %v1243, 0.0
        %v1246 = vsel %vm654, %v1244, 0.0
        %v1247 = vld [vmem:[%s7] sm:$0xf]
        %v1248 = vld [vmem:[%s7 + $0x4] sm:$0xf]
        %v1249 = vld [vmem:[%s8] sm:$0xff]
        %v1250 = vld [vmem:[%s8 + $0x8] sm:$0xff]
        %1251 = vrot.lane.b32.xlu0 %v1245, 36
        %v1252 = vpop.permute.xlu0 %1251
        %v1253 = vsel %vm600, %v1252, %v1245
        %1254 = vrot.lane.b32.xlu0 %v1246, 36
        %v1255 = vpop.permute.xlu0 %1254
        %v1256 = vsel %vm600, %v1255, %v1246
        %1257 = vrot.lane.b32.xlu0 %v1253, 36
        %v1258 = vpop.permute.xlu0 %1257
        %1259 = vrot.lane.b32.xlu0 %v1256, 36
        %v1260 = vpop.permute.xlu0 %1259
        %v1261 = vsel %vm600, %v1258, %v1245
        %v1262 = vsel %vm600, %v1260, %v1246
        %1265 = vrot.lane.b32.xlu0 %v1079, 35
        %v1266 = vpop.permute.xlu0 %1265
        %1267 = vrot.lane.b32.xlu0 %v1080, 35
        %v1268 = vpop.permute.xlu0 %1267
        %1273 = vrot.lane.b32.xlu0 %v1131, 35
        %v1274 = vpop.permute.xlu0 %1273
        %1275 = vrot.lane.b32.xlu0 %v1132, 35
        %v1276 = vpop.permute.xlu0 %1275
        %v1279 = vpack.c.bf16 %v1262, %v1261
        %v1280 = vpack.c.bf16 %v1268, %v1266
        %v1281 = vpack.c.bf16 %v1276, %v1274
        %1283 = vset.pattern.permute.xlu0 0
        %1284 = vperm.xlu0 %1283, %v1249
        %v1285 = vpop.permute.xlu0 %1284
        %1288 = vset.pattern.permute.xlu0 0
        %1289 = vperm.xlu0 %1288, %v1250
        %v1290 = vpop.permute.xlu0 %1289
        %v1294 = vunpack.c.l.b16 %v1247
        %v1295 = vunpack.c.l.b16 %v1248
        %v1296 = vpack.c.b16 %v1295, %v1294
        %1300 = vrot.lane.b32.xlu0 %v1279, 93
        %v1301 = vpop.permute.xlu0 %1300
        %1302 = vrot.lane.b32.xlu0 %v1280, 93
        %v1303 = vpop.permute.xlu0 %1302
        %1304 = vrot.lane.b32.xlu0 %v1281, 93
        %v1305 = vpop.permute.xlu0 %1304
        %vm1309 = vcmask 392192
        %v1311 = vsel %vm1309, %v1296, 0
        %1313 = vmatprep.subr.bf16.mxu0 0
        %1314 = vmatpush1.bf16.msra.mxu0 0
        %1315 = vmatprep.subr.bf16.mxu0 0
        %1316 = vmatpush1.bf16.msra.mxu0 0
        %1317 = vmatprep.subr.bf16.mxu0 0
        %1318 = vmatpush1.bf16.msra.mxu0 0
        %1319 = vmatprep.subr.bf16.mxu0 0
        %1320 = vmatpush1.bf16.msra.mxu0 0
        %1321 = vmatprep.subr.bf16.mxu0 0
        %1322 = vmatpush1.bf16.msra.mxu0 0
        %1323 = vmatprep.subr.bf16.mxu0 0
        %1324 = vmatpush1.bf16.msra.mxu0 %v1305
        %1325 = vmatprep.subr.bf16.mxu0 0
        %1326 = vmatpush1.bf16.msra.mxu0 %v1303
        %1327 = vmatprep.subr.bf16.mxu0 0
        %1328 = vmatpush1.bf16.msra.mxu0 %v1301
        %1329 = vmatprep.subr.bf16.mxu0 0
        %1330 = vmatpush2.bf16.msra.mxu0 0
        %1331 = vmatprep.subr.bf16.mxu0 0
        %1332 = vmatpush2.bf16.msra.mxu0 0
        %1333 = vmatprep.subr.bf16.mxu0 0
        %1334 = vmatpush2.bf16.msra.mxu0 0
        %1335 = vmatprep.subr.bf16.mxu0 0
        %1336 = vmatpush2.bf16.msra.mxu0 0
        %1337 = vmatprep.subr.bf16.mxu0 0
        %1338 = vmatpush2.bf16.msra.mxu0 0
        %1339 = vmatprep.subr.bf16.mxu0 0
        %1340 = vmatpush2.bf16.msra.mxu0 0
        %1341 = vmatprep.subr.bf16.mxu0 0
        %1342 = vmatpush2.bf16.msra.mxu0 0
        %1343 = vmatprep.subr.bf16.mxu0 0
        %1344 = vmatpush2.bf16.msra.mxu0 0
        %1345 = vmatprep.mubr.bf16.mxu0 0
        %1346 = vmatmul.mubr.bf16.gmra.mxu0 %v1311
        %v1347 = vpop.f32.mrf.mxu0
        %v1348 = vadd.f32 %v1285, %v1347
        %v1349 = vpop.f32.mrf.mxu0
        %v1350 = vpop.f32.mrf.mxu0
        %v1351 = vadd.f32 %v1290, %v1350
        %v1352 = vpop.f32.mrf.mxu0
        %1353 = vdwg.mxu0
        %v1354 = vmul.f32 %v1348, 0.2
        %v1355 = vmul.f32 %v1351, 0.2
        %v1356 = vmax.f32 %v1348, %v1354
        %v1357 = vmax.f32 %v1351, %v1355
        %v1358 = vsel %vm654, %v1356, 0.0
        %v1359 = vsel %vm654, %v1357, 0.0
        %v1360 = vpack.c.bf16 %v1132, %v1131
        %v1361 = vpack.c.bf16 %v1184, %v1183
        %v1362 = vpack.c.bf16 %v1246, %v1245
        %1363 = vmatprep.subr.bf16.mxu0 0
        %1364 = vmatpush1.bf16.msra.mxu0 0
        %1365 = vmatprep.subr.bf16.mxu0 0
        %1366 = vmatpush1.bf16.msra.mxu0 0
        %1367 = vmatprep.subr.bf16.mxu0 0
        %1368 = vmatpush1.bf16.msra.mxu0 0
        %1369 = vmatprep.subr.bf16.mxu0 0
        %1370 = vmatpush1.bf16.msra.mxu0 0
        %1371 = vmatprep.subr.bf16.mxu0 0
        %1372 = vmatpush1.bf16.msra.mxu0 0
        %1373 = vmatprep.subr.bf16.mxu0 0
        %1374 = vmatpush1.bf16.msra.mxu0 %v1362
        %1375 = vmatprep.subr.bf16.mxu0 0
        %1376 = vmatpush1.bf16.msra.mxu0 %v1361
        %1377 = vmatprep.subr.bf16.mxu0 0
        %1378 = vmatpush1.bf16.msra.mxu0 %v1360
        %1379 = vmatprep.subr.bf16.mxu0 0
        %1380 = vmatpush2.bf16.msra.mxu0 0
        %1381 = vmatprep.subr.bf16.mxu0 0
        %1382 = vmatpush2.bf16.msra.mxu0 0
        %1383 = vmatprep.subr.bf16.mxu0 0
        %1384 = vmatpush2.bf16.msra.mxu0 0
        %1385 = vmatprep.subr.bf16.mxu0 0
        %1386 = vmatpush2.bf16.msra.mxu0 0
        %1387 = vmatprep.subr.bf16.mxu0 0
        %1388 = vmatpush2.bf16.msra.mxu0 0
        %1389 = vmatprep.subr.bf16.mxu0 0
        %1390 = vmatpush2.bf16.msra.mxu0 0
        %1391 = vmatprep.subr.bf16.mxu0 0
        %1392 = vmatpush2.bf16.msra.mxu0 0
        %1393 = vmatprep.subr.bf16.mxu0 0
        %1394 = vmatpush2.bf16.msra.mxu0 0
        %1395 = vmatprep.mubr.bf16.mxu0 0
        %1396 = vmatmul.mubr.bf16.gmra.mxu0 %v1311
        %v1397 = vpop.f32.mrf.mxu0
        %v1398 = vadd.f32 %v1285, %v1397
        %v1399 = vpop.f32.mrf.mxu0
        %v1400 = vpop.f32.mrf.mxu0
        %v1401 = vadd.f32 %v1290, %v1400
        %v1402 = vpop.f32.mrf.mxu0
        %1403 = vdwg.mxu0
        %v1404 = vmul.f32 %v1398, 0.2
        %v1405 = vmul.f32 %v1401, 0.2
        %v1406 = vmax.f32 %v1398, %v1404
        %v1407 = vmax.f32 %v1401, %v1405
        %v1408 = vsel %vm654, %v1406, 0.0
        %v1409 = vsel %vm654, %v1407, 0.0
        %v1410 = vld [vmem:[%s9] sm:$0xf]
        %v1411 = vld [vmem:[%s9 + $0x4] sm:$0xf]
        %v1412 = vld [vmem:[%s9 + $0x8] sm:$0xf]
        %v1413 = vld [vmem:[%s9 + $0xc] sm:$0xf]
        %v1414 = vld [vmem:[%s10] sm:$0xff]
        %v1415 = vld [vmem:[%s10 + $0x8] sm:$0xff]
        %v1416 = vld [vmem:[%s10 + $0x10] sm:$0xff]
        %v1417 = vld [vmem:[%s10 + $0x18] sm:$0xff]
        %1418 = vrot.lane.b32.xlu0 %v1408, 36
        %v1419 = vpop.permute.xlu0 %1418
        %v1420 = vsel %vm600, %v1419, %v1408
        %1421 = vrot.lane.b32.xlu0 %v1409, 36
        %v1422 = vpop.permute.xlu0 %1421
        %v1423 = vsel %vm600, %v1422, %v1409
        %1424 = vrot.lane.b32.xlu0 %v1420, 36
        %v1425 = vpop.permute.xlu0 %1424
        %1426 = vrot.lane.b32.xlu0 %v1423, 36
        %v1427 = vpop.permute.xlu0 %1426
        %v1428 = vsel %vm600, %v1425, %v1408
        %v1429 = vsel %vm600, %v1427, %v1409
        %1432 = vrot.lane.b32.xlu0 %v1358, 35
        %v1433 = vpop.permute.xlu0 %1432
        %1434 = vrot.lane.b32.xlu0 %v1359, 35
        %v1435 = vpop.permute.xlu0 %1434
        %1440 = vrot.lane.b32.xlu0 %v1408, 35
        %v1441 = vpop.permute.xlu0 %1440
        %1442 = vrot.lane.b32.xlu0 %v1409, 35
        %v1443 = vpop.permute.xlu0 %1442
        %v1446 = vpack.c.bf16 %v1429, %v1428
        %v1447 = vpack.c.bf16 %v1435, %v1433
        %v1448 = vpack.c.bf16 %v1443, %v1441
        %1450 = vset.pattern.permute.xlu0 0
        %1451 = vperm.xlu0 %1450, %v1414
        %v1452 = vpop.permute.xlu0 %1451
        %1455 = vset.pattern.permute.xlu0 0
        %1456 = vperm.xlu0 %1455, %v1415
        %v1457 = vpop.permute.xlu0 %1456
        %1460 = vset.pattern.permute.xlu0 0
        %1461 = vperm.xlu0 %1460, %v1416
        %v1462 = vpop.permute.xlu0 %1461
        %1465 = vset.pattern.permute.xlu0 0
        %1466 = vperm.xlu0 %1465, %v1417
        %v1467 = vpop.permute.xlu0 %1466
        %v1473 = vunpack.c.l.b16 %v1410
        %v1474 = vunpack.c.l.b16 %v1411
        %v1475 = vunpack.c.l.b16 %v1412
        %v1476 = vunpack.c.l.b16 %v1413
        %v1477 = vpack.c.b16 %v1474, %v1473
        %v1478 = vpack.c.b16 %v1476, %v1475
        %1482 = vrot.lane.b32.xlu0 %v1446, 93
        %v1483 = vpop.permute.xlu0 %1482
        %1484 = vrot.lane.b32.xlu0 %v1447, 93
        %v1485 = vpop.permute.xlu0 %1484
        %1486 = vrot.lane.b32.xlu0 %v1448, 93
        %v1487 = vpop.permute.xlu0 %1486
        %v1492 = vsel %vm1309, %v1477, 0
        %v1495 = vsel %vm1309, %v1478, 0
        %1497 = vmatprep.subr.bf16.mxu0 0
        %1498 = vmatpush1.bf16.msra.mxu0 0
        %1499 = vmatprep.subr.bf16.mxu0 0
        %1500 = vmatpush1.bf16.msra.mxu0 0
        %1501 = vmatprep.subr.bf16.mxu0 0
        %1502 = vmatpush1.bf16.msra.mxu0 0
        %1503 = vmatprep.subr.bf16.mxu0 0
        %1504 = vmatpush1.bf16.msra.mxu0 0
        %1505 = vmatprep.subr.bf16.mxu0 0
        %1506 = vmatpush1.bf16.msra.mxu0 0
        %1507 = vmatprep.subr.bf16.mxu0 0
        %1508 = vmatpush1.bf16.msra.mxu0 %v1487
        %1509 = vmatprep.subr.bf16.mxu0 0
        %1510 = vmatpush1.bf16.msra.mxu0 %v1485
        %1511 = vmatprep.subr.bf16.mxu0 0
        %1512 = vmatpush1.bf16.msra.mxu0 %v1483
        %1513 = vmatprep.subr.bf16.mxu0 0
        %1514 = vmatpush2.bf16.msra.mxu0 0
        %1515 = vmatprep.subr.bf16.mxu0 0
        %1516 = vmatpush2.bf16.msra.mxu0 0
        %1517 = vmatprep.subr.bf16.mxu0 0
        %1518 = vmatpush2.bf16.msra.mxu0 0
        %1519 = vmatprep.subr.bf16.mxu0 0
        %1520 = vmatpush2.bf16.msra.mxu0 0
        %1521 = vmatprep.subr.bf16.mxu0 0
        %1522 = vmatpush2.bf16.msra.mxu0 0
        %1523 = vmatprep.subr.bf16.mxu0 0
        %1524 = vmatpush2.bf16.msra.mxu0 0
        %1525 = vmatprep.subr.bf16.mxu0 0
        %1526 = vmatpush2.bf16.msra.mxu0 0
        %1527 = vmatprep.subr.bf16.mxu0 0
        %1528 = vmatpush2.bf16.msra.mxu0 0
        %1529 = vmatprep.mubr.bf16.mxu0 0
        %1530 = vmatmul.mubr.bf16.gmra.mxu0 %v1492
        %v1531 = vpop.f32.mrf.mxu0
        %v1532 = vadd.f32 %v1452, %v1531
        %v1533 = vpop.f32.mrf.mxu0
        %v1534 = vpop.f32.mrf.mxu0
        %v1535 = vadd.f32 %v1457, %v1534
        %v1536 = vpop.f32.mrf.mxu0
        %1537 = vmatprep.mubr.bf16.mxu0 0
        %1538 = vmatmul.mubr.bf16.gmra.mxu0 %v1495
        %v1539 = vpop.f32.mrf.mxu0
        %v1540 = vadd.f32 %v1462, %v1539
        %v1541 = vpop.f32.mrf.mxu0
        %v1542 = vpop.f32.mrf.mxu0
        %v1543 = vadd.f32 %v1467, %v1542
        %v1544 = vpop.f32.mrf.mxu0
        %1545 = vdwg.mxu0
        %v1546 = vmul.f32 %v1532, 0.2
        %v1547 = vmul.f32 %v1535, 0.2
        %v1548 = vmul.f32 %v1540, 0.2
        %v1549 = vmul.f32 %v1543, 0.2
        %v1550 = vmax.f32 %v1532, %v1546
        %v1551 = vmax.f32 %v1535, %v1547
        %v1552 = vmax.f32 %v1540, %v1548
        %v1553 = vmax.f32 %v1543, %v1549
        %v1554 = vsel %vm654, %v1550, 0.0
        %v1555 = vsel %vm654, %v1551, 0.0
        %v1556 = vsel %vm654, %v1552, 0.0
        %v1557 = vsel %vm654, %v1553, 0.0
        %1558 = vrot.lane.b32.xlu0 %v1358, 36
        %v1559 = vpop.permute.xlu0 %1558
        %v1560 = vsel %vm600, %v1559, %v1358
        %1561 = vrot.lane.b32.xlu0 %v1359, 36
        %v1562 = vpop.permute.xlu0 %1561
        %v1563 = vsel %vm600, %v1562, %v1359
        %1564 = vrot.lane.b32.xlu0 %v1560, 36
        %v1565 = vpop.permute.xlu0 %1564
        %1566 = vrot.lane.b32.xlu0 %v1563, 36
        %v1567 = vpop.permute.xlu0 %1566
        %v1568 = vsel %vm600, %v1565, %v1358
        %v1569 = vsel %vm600, %v1567, %v1359
        %1572 = vrot.lane.b32.xlu0 %v1568, 127
        %v1573 = vpop.permute.xlu0 %1572
        %1574 = vrot.lane.b32.xlu0 %v1569, 127
        %v1575 = vpop.permute.xlu0 %1574
        %v1578 = vpack.c.bf16 %v1359, %v1358
        %v1579 = vpack.c.bf16 %v1409, %v1408
        %v1580 = vpack.c.bf16 %v1575, %v1573
        %1581 = vmatprep.subr.bf16.mxu0 0
        %1582 = vmatpush1.bf16.msra.mxu0 0
        %1583 = vmatprep.subr.bf16.mxu0 0
        %1584 = vmatpush1.bf16.msra.mxu0 0
        %1585 = vmatprep.subr.bf16.mxu0 0
        %1586 = vmatpush1.bf16.msra.mxu0 0
        %1587 = vmatprep.subr.bf16.mxu0 0
        %1588 = vmatpush1.bf16.msra.mxu0 0
        %1589 = vmatprep.subr.bf16.mxu0 0
        %1590 = vmatpush1.bf16.msra.mxu0 0
        %1591 = vmatprep.subr.bf16.mxu0 0
        %1592 = vmatpush1.bf16.msra.mxu0 %v1580
        %1593 = vmatprep.subr.bf16.mxu0 0
        %1594 = vmatpush1.bf16.msra.mxu0 %v1579
        %1595 = vmatprep.subr.bf16.mxu0 0
        %1596 = vmatpush1.bf16.msra.mxu0 %v1578
        %1597 = vmatprep.subr.bf16.mxu0 0
        %1598 = vmatpush2.bf16.msra.mxu0 0
        %1599 = vmatprep.subr.bf16.mxu0 0
        %1600 = vmatpush2.bf16.msra.mxu0 0
        %1601 = vmatprep.subr.bf16.mxu0 0
        %1602 = vmatpush2.bf16.msra.mxu0 0
        %1603 = vmatprep.subr.bf16.mxu0 0
        %1604 = vmatpush2.bf16.msra.mxu0 0
        %1605 = vmatprep.subr.bf16.mxu0 0
        %1606 = vmatpush2.bf16.msra.mxu0 0
        %1607 = vmatprep.subr.bf16.mxu0 0
        %1608 = vmatpush2.bf16.msra.mxu0 0
        %1609 = vmatprep.subr.bf16.mxu0 0
        %1610 = vmatpush2.bf16.msra.mxu0 0
        %1611 = vmatprep.subr.bf16.mxu0 0
        %1612 = vmatpush2.bf16.msra.mxu0 0
        %1613 = vmatprep.mubr.bf16.mxu0 0
        %1614 = vmatmul.mubr.bf16.gmra.mxu0 %v1492
        %v1615 = vpop.f32.mrf.mxu0
        %v1616 = vadd.f32 %v1452, %v1615
        %v1617 = vpop.f32.mrf.mxu0
        %v1618 = vpop.f32.mrf.mxu0
        %v1619 = vadd.f32 %v1457, %v1618
        %v1620 = vpop.f32.mrf.mxu0
        %1621 = vmatprep.mubr.bf16.mxu0 0
        %1622 = vmatmul.mubr.bf16.gmra.mxu0 %v1495
        %v1623 = vpop.f32.mrf.mxu0
        %v1624 = vadd.f32 %v1462, %v1623
        %v1625 = vpop.f32.mrf.mxu0
        %v1626 = vpop.f32.mrf.mxu0
        %v1627 = vadd.f32 %v1467, %v1626
        %v1628 = vpop.f32.mrf.mxu0
        %1629 = vdwg.mxu0
        %v1630 = vmul.f32 %v1616, 0.2
        %v1631 = vmul.f32 %v1619, 0.2
        %v1632 = vmul.f32 %v1624, 0.2
        %v1633 = vmul.f32 %v1627, 0.2
        %v1634 = vmax.f32 %v1616, %v1630
        %v1635 = vmax.f32 %v1619, %v1631
        %v1636 = vmax.f32 %v1624, %v1632
        %v1637 = vmax.f32 %v1627, %v1633
        %v1638 = vsel %vm654, %v1634, 0.0
        %v1639 = vsel %vm654, %v1635, 0.0
        %v1640 = vsel %vm654, %v1636, 0.0
        %v1641 = vsel %vm654, %v1637, 0.0
        %v1642 = vld [vmem:[%s11] sm:$0xf]
        %v1643 = vld [vmem:[%s11 + $0x4] sm:$0xf]
        %v1644 = vld [vmem:[%s11 + $0x8] sm:$0xf]
        %v1645 = vld [vmem:[%s11 + $0xc] sm:$0xf]
        %v1646 = vld [vmem:[%s12] sm:$0xff]
        %v1647 = vld [vmem:[%s12 + $0x8] sm:$0xff]
        %v1648 = vld [vmem:[%s12 + $0x10] sm:$0xff]
        %v1649 = vld [vmem:[%s12 + $0x18] sm:$0xff]
        %1650 = vrot.lane.b32.xlu0 %v1638, 36
        %v1651 = vpop.permute.xlu0 %1650
        %v1652 = vsel %vm600, %v1651, %v1638
        %1653 = vrot.lane.b32.xlu0 %v1639, 36
        %v1654 = vpop.permute.xlu0 %1653
        %v1655 = vsel %vm600, %v1654, %v1639
        %1656 = vrot.lane.b32.xlu0 %v1640, 36
        %v1657 = vpop.permute.xlu0 %1656
        %v1658 = vsel %vm600, %v1657, %v1640
        %1659 = vrot.lane.b32.xlu0 %v1641, 36
        %v1660 = vpop.permute.xlu0 %1659
        %v1661 = vsel %vm600, %v1660, %v1641
        %1662 = vrot.lane.b32.xlu0 %v1652, 36
        %v1663 = vpop.permute.xlu0 %1662
        %1664 = vrot.lane.b32.xlu0 %v1655, 36
        %v1665 = vpop.permute.xlu0 %1664
        %1666 = vrot.lane.b32.xlu0 %v1658, 36
        %v1667 = vpop.permute.xlu0 %1666
        %1668 = vrot.lane.b32.xlu0 %v1661, 36
        %v1669 = vpop.permute.xlu0 %1668
        %v1670 = vsel %vm600, %v1663, %v1638
        %v1671 = vsel %vm600, %v1665, %v1639
        %v1672 = vsel %vm600, %v1667, %v1640
        %v1673 = vsel %vm600, %v1669, %v1641
        %1678 = vrot.lane.b32.xlu0 %v1554, 35
        %v1679 = vpop.permute.xlu0 %1678
        %1680 = vrot.lane.b32.xlu0 %v1555, 35
        %v1681 = vpop.permute.xlu0 %1680
        %1682 = vrot.lane.b32.xlu0 %v1556, 35
        %v1683 = vpop.permute.xlu0 %1682
        %1684 = vrot.lane.b32.xlu0 %v1557, 35
        %v1685 = vpop.permute.xlu0 %1684
        %1694 = vrot.lane.b32.xlu0 %v1638, 35
        %v1695 = vpop.permute.xlu0 %1694
        %1696 = vrot.lane.b32.xlu0 %v1639, 35
        %v1697 = vpop.permute.xlu0 %1696
        %1698 = vrot.lane.b32.xlu0 %v1640, 35
        %v1699 = vpop.permute.xlu0 %1698
        %1700 = vrot.lane.b32.xlu0 %v1641, 35
        %v1701 = vpop.permute.xlu0 %1700
        %v1706 = vpack.c.bf16 %v1671, %v1670
        %v1707 = vpack.c.bf16 %v1673, %v1672
        %v1708 = vpack.c.bf16 %v1681, %v1679
        %v1709 = vpack.c.bf16 %v1685, %v1683
        %v1710 = vpack.c.bf16 %v1697, %v1695
        %v1711 = vpack.c.bf16 %v1701, %v1699
        %1713 = vset.pattern.permute.xlu0 0
        %1714 = vperm.xlu0 %1713, %v1646
        %v1715 = vpop.permute.xlu0 %1714
        %1718 = vset.pattern.permute.xlu0 0
        %1719 = vperm.xlu0 %1718, %v1647
        %v1720 = vpop.permute.xlu0 %1719
        %1723 = vset.pattern.permute.xlu0 0
        %1724 = vperm.xlu0 %1723, %v1648
        %v1725 = vpop.permute.xlu0 %1724
        %1728 = vset.pattern.permute.xlu0 0
        %1729 = vperm.xlu0 %1728, %v1649
        %v1730 = vpop.permute.xlu0 %1729
        %v1736 = vunpack.c.l.b16 %v1642
        %v1737 = vunpack.c.l.b16 %v1643
        %v1738 = vunpack.c.l.b16 %v1644
        %v1739 = vunpack.c.l.b16 %v1645
        %v1740 = vpack.c.b16 %v1737, %v1736
        %v1741 = vpack.c.b16 %v1739, %v1738
        %1748 = vrot.lane.b32.xlu0 %v1706, 93
        %v1749 = vpop.permute.xlu0 %1748
        %1750 = vrot.lane.b32.xlu0 %v1707, 93
        %v1751 = vpop.permute.xlu0 %1750
        %1752 = vrot.lane.b32.xlu0 %v1708, 93
        %v1753 = vpop.permute.xlu0 %1752
        %1754 = vrot.lane.b32.xlu0 %v1709, 93
        %v1755 = vpop.permute.xlu0 %1754
        %1756 = vrot.lane.b32.xlu0 %v1710, 93
        %v1757 = vpop.permute.xlu0 %1756
        %1758 = vrot.lane.b32.xlu0 %v1711, 93
        %v1759 = vpop.permute.xlu0 %1758
        %vm1766 = vcmask 785408
        %v1768 = vsel %vm1766, %v1740, 0
        %v1771 = vsel %vm1766, %v1741, 0
        %1773 = vmatprep.subr.bf16.mxu0 0
        %1774 = vmatpush1.bf16.msra.mxu0 0
        %1775 = vmatprep.subr.bf16.mxu0 0
        %1776 = vmatpush1.bf16.msra.mxu0 0
        %1777 = vmatprep.subr.bf16.mxu0 0
        %1778 = vmatpush1.bf16.msra.mxu0 %v1759
        %1779 = vmatprep.subr.bf16.mxu0 0
        %1780 = vmatpush1.bf16.msra.mxu0 %v1757
        %1781 = vmatprep.subr.bf16.mxu0 0
        %1782 = vmatpush1.bf16.msra.mxu0 %v1755
        %1783 = vmatprep.subr.bf16.mxu0 0
        %1784 = vmatpush1.bf16.msra.mxu0 %v1753
        %1785 = vmatprep.subr.bf16.mxu0 0
        %1786 = vmatpush1.bf16.msra.mxu0 %v1751
        %1787 = vmatprep.subr.bf16.mxu0 0
        %1788 = vmatpush1.bf16.msra.mxu0 %v1749
        %1789 = vmatprep.subr.bf16.mxu0 0
        %1790 = vmatpush2.bf16.msra.mxu0 0
        %1791 = vmatprep.subr.bf16.mxu0 0
        %1792 = vmatpush2.bf16.msra.mxu0 0
        %1793 = vmatprep.subr.bf16.mxu0 0
        %1794 = vmatpush2.bf16.msra.mxu0 0
        %1795 = vmatprep.subr.bf16.mxu0 0
        %1796 = vmatpush2.bf16.msra.mxu0 0
        %1797 = vmatprep.subr.bf16.mxu0 0
        %1798 = vmatpush2.bf16.msra.mxu0 0
        %1799 = vmatprep.subr.bf16.mxu0 0
        %1800 = vmatpush2.bf16.msra.mxu0 0
        %1801 = vmatprep.subr.bf16.mxu0 0
        %1802 = vmatpush2.bf16.msra.mxu0 0
        %1803 = vmatprep.subr.bf16.mxu0 0
        %1804 = vmatpush2.bf16.msra.mxu0 0
        %1805 = vmatprep.mubr.bf16.mxu0 0
        %1806 = vmatmul.mubr.bf16.gmra.mxu0 %v1768
        %v1807 = vpop.f32.mrf.mxu0
        %v1808 = vadd.f32 %v1715, %v1807
        %v1809 = vpop.f32.mrf.mxu0
        %v1810 = vpop.f32.mrf.mxu0
        %v1811 = vadd.f32 %v1720, %v1810
        %v1812 = vpop.f32.mrf.mxu0
        %1813 = vmatprep.mubr.bf16.mxu0 0
        %1814 = vmatmul.mubr.bf16.gmra.mxu0 %v1771
        %v1815 = vpop.f32.mrf.mxu0
        %v1816 = vadd.f32 %v1725, %v1815
        %v1817 = vpop.f32.mrf.mxu0
        %v1818 = vpop.f32.mrf.mxu0
        %v1819 = vadd.f32 %v1730, %v1818
        %v1820 = vpop.f32.mrf.mxu0
        %1821 = vdwg.mxu0
        %v1822 = vmul.f32 %v1808, 0.2
        %v1823 = vmul.f32 %v1811, 0.2
        %v1824 = vmul.f32 %v1816, 0.2
        %v1825 = vmul.f32 %v1819, 0.2
        %v1826 = vmax.f32 %v1808, %v1822
        %v1827 = vmax.f32 %v1811, %v1823
        %v1828 = vmax.f32 %v1816, %v1824
        %v1829 = vmax.f32 %v1819, %v1825
        %v1830 = vsel %vm654, %v1826, 0.0
        %v1831 = vsel %vm654, %v1827, 0.0
        %v1832 = vsel %vm654, %v1828, 0.0
        %v1833 = vsel %vm654, %v1829, 0.0
        %v1834 = vld [vmem:[%s17] sm:$0xff]
        %v1835 = vld [vmem:[%s17 + $0x8] sm:$0xff]
        %v1836 = vld [vmem:[%s17 + $0x10] sm:$0xff]
        %v1837 = vld [vmem:[%s17 + $0x18] sm:$0xff]
        %v1838 = vld [vmem:[%s17 + $0x20] sm:$0xf]
        %vm1839 = vcmask 293888
        %v1841 = vsel %vm1839, %v1830, 0
        %v1844 = vsel %vm1839, %v1831, 0
        %v1847 = vsel %vm1839, %v1832, 0
        %v1850 = vsel %vm1839, %v1833, 0
        %v1853 = vsel %vm795, %v1838, 0
        %1855 = vmatprep.subr.mxu0 0.0
        %1856 = vmatpush1.msra.mxu0 0.0
        %1857 = vmatprep.subr.mxu0 0.0
        %1858 = vmatpush1.msra.mxu0 0.0
        %1859 = vmatprep.subr.mxu0 0.0
        %1860 = vmatpush1.msra.mxu0 0.0
        %1861 = vmatprep.subr.mxu0 0.0
        %1862 = vmatpush1.msra.mxu0 0.0
        %1863 = vmatprep.subr.mxu0 0.0
        %1864 = vmatpush1.msra.mxu0 0.0
        %1865 = vmatprep.subr.mxu0 0.0
        %1866 = vmatpush1.msra.mxu0 0.0
        %1867 = vmatprep.subr.mxu0 0.0
        %1868 = vmatpush1.msra.mxu0 0.0
        %1869 = vmatprep.subr.mxu0 0.0
        %1870 = vmatpush1.msra.mxu0 0.0
        %1871 = vmatprep.subr.mxu0 0.0
        %1872 = vmatpush1.msra.mxu0 0.0
        %1873 = vmatprep.subr.mxu0 0.0
        %1874 = vmatpush1.msra.mxu0 0.0
        %1875 = vmatprep.subr.mxu0 0.0
        %1876 = vmatpush1.msra.mxu0 0.0
        %1877 = vmatprep.subr.mxu0 0.0
        %1878 = vmatpush1.msra.mxu0 %v1853
        %1879 = vmatprep.subr.mxu0 0.0
        %1880 = vmatpush1.msra.mxu0 %v1837
        %1881 = vmatprep.subr.mxu0 0.0
        %1882 = vmatpush1.msra.mxu0 %v1836
        %1883 = vmatprep.subr.mxu0 0.0
        %1884 = vmatpush1.msra.mxu0 %v1835
        %1885 = vmatprep.subr.mxu0 0.0
        %1886 = vmatpush1.msra.mxu0 %v1834
        %1887 = vmatprep.subr.mxu0 0.0
        %1888 = vmatpush2.msra.mxu0 0.0
        %1889 = vmatprep.subr.mxu0 0.0
        %1890 = vmatpush2.msra.mxu0 0.0
        %1891 = vmatprep.subr.mxu0 0.0
        %1892 = vmatpush2.msra.mxu0 0.0
        %1893 = vmatprep.subr.mxu0 0.0
        %1894 = vmatpush2.msra.mxu0 0.0
        %1895 = vmatprep.subr.mxu0 0.0
        %1896 = vmatpush2.msra.mxu0 0.0
        %1897 = vmatprep.subr.mxu0 0.0
        %1898 = vmatpush2.msra.mxu0 0.0
        %1899 = vmatprep.subr.mxu0 0.0
        %1900 = vmatpush2.msra.mxu0 0.0
        %1901 = vmatprep.subr.mxu0 0.0
        %1902 = vmatpush2.msra.mxu0 0.0
        %1903 = vmatprep.subr.mxu0 0.0
        %1904 = vmatpush2.msra.mxu0 0.0
        %1905 = vmatprep.subr.mxu0 0.0
        %1906 = vmatpush2.msra.mxu0 0.0
        %1907 = vmatprep.subr.mxu0 0.0
        %1908 = vmatpush2.msra.mxu0 0.0
        %1909 = vmatprep.subr.mxu0 0.0
        %1910 = vmatpush2.msra.mxu0 0.0
        %1911 = vmatprep.subr.mxu0 0.0
        %1912 = vmatpush2.msra.mxu0 0.0
        %1913 = vmatprep.subr.mxu0 0.0
        %1914 = vmatpush2.msra.mxu0 0.0
        %1915 = vmatprep.subr.mxu0 0.0
        %1916 = vmatpush2.msra.mxu0 0.0
        %1917 = vmatprep.subr.mxu0 0.0
        %1918 = vmatpush2.msra.mxu0 0.0
        %1919 = vmatprep.mubr.f32.mxu0 0.0
        %1920 = vmatmul.mubr.f32.gmra.mxu0 %v1841
        %v1921 = vpop.f32.mrf.mxu0
        %v1922 = vadd.f32 0.0, %v1921
        %v1923 = vpop.f32.mrf.mxu0
        %1924 = vmatprep.mubr.f32.mxu0 0.0
        %1925 = vmatmul.mubr.f32.gmra.mxu0 %v1844
        %v1926 = vpop.f32.mrf.mxu0
        %v1927 = vadd.f32 0.0, %v1926
        %v1928 = vpop.f32.mrf.mxu0
        %1929 = vmatprep.mubr.f32.mxu0 0.0
        %1930 = vmatmul.mubr.f32.gmra.mxu0 %v1847
        %v1931 = vpop.f32.mrf.mxu0
        %v1932 = vadd.f32 0.0, %v1931
        %v1933 = vpop.f32.mrf.mxu0
        %1934 = vmatprep.mubr.f32.mxu0 0.0
        %1935 = vmatmul.mubr.f32.gmra.mxu0 %v1850
        %v1936 = vpop.f32.mrf.mxu0
        %v1937 = vadd.f32 0.0, %v1936
        %v1938 = vpop.f32.mrf.mxu0
        %1939 = vdwg.mxu0
        %v1940 = vld [vmem:[%s13] sm:$0xff]
        %v1941 = vld [vmem:[%s13 + $0x8] sm:$0xff]
        %v1942 = vld [vmem:[%s13 + $0x10] sm:$0xff]
        %v1943 = vld [vmem:[%s13 + $0x18] sm:$0xff]
        %v1944 = vld [vmem:[%s13 + $0x20] sm:$0xff]
        %v1945 = vld [vmem:[%s13 + $0x28] sm:$0xff]
        %v1946 = vld [vmem:[%s13 + $0x30] sm:$0xff]
        %v1947 = vld [vmem:[%s13 + $0x38] sm:$0xff]
        %v1948 = vld [vmem:[%s14] sm:$0xff]
        %v1949 = vld [vmem:[%s14 + $0x8] sm:$0xff]
        %v1950 = vld [vmem:[%s14 + $0x10] sm:$0xff]
        %v1951 = vld [vmem:[%s14 + $0x18] sm:$0xff]
        %v1952 = vld [vmem:[%s14 + $0x20] sm:$0xff]
        %v1953 = vld [vmem:[%s14 + $0x28] sm:$0xff]
        %v1954 = vld [vmem:[%s14 + $0x30] sm:$0xff]
        %v1955 = vld [vmem:[%s14 + $0x38] sm:$0xff]
        %1957 = vset.pattern.permute.xlu0 0
        %1958 = vperm.xlu0 %1957, %v1948
        %v1959 = vpop.permute.xlu0 %1958
        %1962 = vset.pattern.permute.xlu0 0
        %1963 = vperm.xlu0 %1962, %v1949
        %v1964 = vpop.permute.xlu0 %1963
        %1967 = vset.pattern.permute.xlu0 0
        %1968 = vperm.xlu0 %1967, %v1950
        %v1969 = vpop.permute.xlu0 %1968
        %1972 = vset.pattern.permute.xlu0 0
        %1973 = vperm.xlu0 %1972, %v1951
        %v1974 = vpop.permute.xlu0 %1973
        %1977 = vset.pattern.permute.xlu0 0
        %1978 = vperm.xlu0 %1977, %v1952
        %v1979 = vpop.permute.xlu0 %1978
        %1982 = vset.pattern.permute.xlu0 0
        %1983 = vperm.xlu0 %1982, %v1953
        %v1984 = vpop.permute.xlu0 %1983
        %1987 = vset.pattern.permute.xlu0 0
        %1988 = vperm.xlu0 %1987, %v1954
        %v1989 = vpop.permute.xlu0 %1988
        %1992 = vset.pattern.permute.xlu0 0
        %1993 = vperm.xlu0 %1992, %v1955
        %v1994 = vpop.permute.xlu0 %1993
        %vm1996 = vcmask 261120
        %v1998 = vsel %vm1996, %v1940, 0
        %v2001 = vsel %vm1996, %v1941, 0
        %v2004 = vsel %vm1996, %v1942, 0
        %v2007 = vsel %vm1996, %v1943, 0
        %v2010 = vsel %vm1996, %v1944, 0
        %v2013 = vsel %vm1996, %v1945, 0
        %v2016 = vsel %vm1996, %v1946, 0
        %v2019 = vsel %vm1996, %v1947, 0
        %2021 = vmatprep.subr.mxu0 0.0
        %2022 = vmatpush1.msra.mxu0 0.0
        %2023 = vmatprep.subr.mxu0 0.0
        %2024 = vmatpush1.msra.mxu0 0.0
        %2025 = vmatprep.subr.mxu0 0.0
        %2026 = vmatpush1.msra.mxu0 0.0
        %2027 = vmatprep.subr.mxu0 0.0
        %2028 = vmatpush1.msra.mxu0 0.0
        %2029 = vmatprep.subr.mxu0 0.0
        %2030 = vmatpush1.msra.mxu0 0.0
        %2031 = vmatprep.subr.mxu0 0.0
        %2032 = vmatpush1.msra.mxu0 0.0
        %2033 = vmatprep.subr.mxu0 0.0
        %2034 = vmatpush1.msra.mxu0 0.0
        %2035 = vmatprep.subr.mxu0 0.0
        %2036 = vmatpush1.msra.mxu0 0.0
        %2037 = vmatprep.subr.mxu0 0.0
        %2038 = vmatpush1.msra.mxu0 0.0
        %2039 = vmatprep.subr.mxu0 0.0
        %2040 = vmatpush1.msra.mxu0 0.0
        %2041 = vmatprep.subr.mxu0 0.0
        %2042 = vmatpush1.msra.mxu0 0.0
        %2043 = vmatprep.subr.mxu0 0.0
        %2044 = vmatpush1.msra.mxu0 0.0
        %2045 = vmatprep.subr.mxu0 0.0
        %2046 = vmatpush1.msra.mxu0 %v1937
        %2047 = vmatprep.subr.mxu0 0.0
        %2048 = vmatpush1.msra.mxu0 %v1932
        %2049 = vmatprep.subr.mxu0 0.0
        %2050 = vmatpush1.msra.mxu0 %v1927
        %2051 = vmatprep.subr.mxu0 0.0
        %2052 = vmatpush1.msra.mxu0 %v1922
        %2053 = vmatprep.subr.mxu0 0.0
        %2054 = vmatpush2.msra.mxu0 0.0
        %2055 = vmatprep.subr.mxu0 0.0
        %2056 = vmatpush2.msra.mxu0 0.0
        %2057 = vmatprep.subr.mxu0 0.0
        %2058 = vmatpush2.msra.mxu0 0.0
        %2059 = vmatprep.subr.mxu0 0.0
        %2060 = vmatpush2.msra.mxu0 0.0
        %2061 = vmatprep.subr.mxu0 0.0
        %2062 = vmatpush2.msra.mxu0 0.0
        %2063 = vmatprep.subr.mxu0 0.0
        %2064 = vmatpush2.msra.mxu0 0.0
        %2065 = vmatprep.subr.mxu0 0.0
        %2066 = vmatpush2.msra.mxu0 0.0
        %2067 = vmatprep.subr.mxu0 0.0
        %2068 = vmatpush2.msra.mxu0 0.0
        %2069 = vmatprep.subr.mxu0 0.0
        %2070 = vmatpush2.msra.mxu0 0.0
        %2071 = vmatprep.subr.mxu0 0.0
        %2072 = vmatpush2.msra.mxu0 0.0
        %2073 = vmatprep.subr.mxu0 0.0
        %2074 = vmatpush2.msra.mxu0 0.0
        %2075 = vmatprep.subr.mxu0 0.0
        %2076 = vmatpush2.msra.mxu0 0.0
        %2077 = vmatprep.subr.mxu0 0.0
        %2078 = vmatpush2.msra.mxu0 0.0
        %2079 = vmatprep.subr.mxu0 0.0
        %2080 = vmatpush2.msra.mxu0 0.0
        %2081 = vmatprep.subr.mxu0 0.0
        %2082 = vmatpush2.msra.mxu0 0.0
        %2083 = vmatprep.subr.mxu0 0.0
        %2084 = vmatpush2.msra.mxu0 0.0
        %2085 = vmatprep.mubr.f32.mxu0 0.0
        %2086 = vmatmul.mubr.f32.gmra.mxu0 %v1998
        %v2087 = vpop.f32.mrf.mxu0
        %v2088 = vadd.f32 %v1959, %v2087
        %v2089 = vpop.f32.mrf.mxu0
        %2090 = vmatprep.mubr.f32.mxu0 0.0
        %2091 = vmatmul.mubr.f32.gmra.mxu0 %v2001
        %v2092 = vpop.f32.mrf.mxu0
        %v2093 = vadd.f32 %v1964, %v2092
        %v2094 = vpop.f32.mrf.mxu0
        %2095 = vmatprep.mubr.f32.mxu0 0.0
        %2096 = vmatmul.mubr.f32.gmra.mxu0 %v2004
        %v2097 = vpop.f32.mrf.mxu0
        %v2098 = vadd.f32 %v1969, %v2097
        %v2099 = vpop.f32.mrf.mxu0
        %2100 = vmatprep.mubr.f32.mxu0 0.0
        %2101 = vmatmul.mubr.f32.gmra.mxu0 %v2007
        %v2102 = vpop.f32.mrf.mxu0
        %v2103 = vadd.f32 %v1974, %v2102
        %v2104 = vpop.f32.mrf.mxu0
        %2105 = vmatprep.mubr.f32.mxu0 0.0
        %2106 = vmatmul.mubr.f32.gmra.mxu0 %v2010
        %v2107 = vpop.f32.mrf.mxu0
        %v2108 = vadd.f32 %v1979, %v2107
        %v2109 = vpop.f32.mrf.mxu0
        %2110 = vmatprep.mubr.f32.mxu0 0.0
        %2111 = vmatmul.mubr.f32.gmra.mxu0 %v2013
        %v2112 = vpop.f32.mrf.mxu0
        %v2113 = vadd.f32 %v1984, %v2112
        %v2114 = vpop.f32.mrf.mxu0
        %2115 = vmatprep.mubr.f32.mxu0 0.0
        %2116 = vmatmul.mubr.f32.gmra.mxu0 %v2016
        %v2117 = vpop.f32.mrf.mxu0
        %v2118 = vadd.f32 %v1989, %v2117
        %v2119 = vpop.f32.mrf.mxu0
        %2120 = vmatprep.mubr.f32.mxu0 0.0
        %2121 = vmatmul.mubr.f32.gmra.mxu0 %v2019
        %v2122 = vpop.f32.mrf.mxu0
        %v2123 = vadd.f32 %v1994, %v2122
        %v2124 = vpop.f32.mrf.mxu0
        %2125 = vdwg.mxu0
        %v2126 = vmul.f32 %v2088, 0.2
        %v2127 = vmul.f32 %v2093, 0.2
        %v2128 = vmul.f32 %v2098, 0.2
        %v2129 = vmul.f32 %v2103, 0.2
        %v2130 = vmul.f32 %v2108, 0.2
        %v2131 = vmul.f32 %v2113, 0.2
        %v2132 = vmul.f32 %v2118, 0.2
        %v2133 = vmul.f32 %v2123, 0.2
        %v2134 = vmax.f32 %v2088, %v2126
        %v2135 = vmax.f32 %v2093, %v2127
        %v2136 = vmax.f32 %v2098, %v2128
        %v2137 = vmax.f32 %v2103, %v2129
        %v2138 = vmax.f32 %v2108, %v2130
        %v2139 = vmax.f32 %v2113, %v2131
        %v2140 = vmax.f32 %v2118, %v2132
        %v2141 = vmax.f32 %v2123, %v2133
        %v2142 = vld [vmem:[%s15] sm:$0x1]
        %v2143 = vld [vmem:[#allocation2] sm:$0x1]
        %2145 = vset.pattern.permute.xlu0 0
        %2146 = vperm.xlu0 %2145, %v2143
        %v2147 = vpop.permute.xlu0 %2146
        %v2149 = vlaneseq
        %v2150 = vshrl.u32 %v2149, 7
        %v2151 = vsub.s32 0, %v2150
        %v2152 = vrot.slane %v2147, %v2151
        %vm2153 = vcmask 523264
        %v2155 = vsel %vm2153, %v2142, 0
        %2157 = vmatprep.subr.mxu0 0.0
        %2158 = vmatpush1.msra.mxu0 0.0
        %2159 = vmatprep.subr.mxu0 0.0
        %2160 = vmatpush1.msra.mxu0 0.0
        %2161 = vmatprep.subr.mxu0 0.0
        %2162 = vmatpush1.msra.mxu0 0.0
        %2163 = vmatprep.subr.mxu0 0.0
        %2164 = vmatpush1.msra.mxu0 0.0
        %2165 = vmatprep.subr.mxu0 0.0
        %2166 = vmatpush1.msra.mxu0 0.0
        %2167 = vmatprep.subr.mxu0 0.0
        %2168 = vmatpush1.msra.mxu0 0.0
        %2169 = vmatprep.subr.mxu0 0.0
        %2170 = vmatpush1.msra.mxu0 0.0
        %2171 = vmatprep.subr.mxu0 0.0
        %2172 = vmatpush1.msra.mxu0 0.0
        %2173 = vmatprep.subr.mxu0 0.0
        %2174 = vmatpush1.msra.mxu0 %v2141
        %2175 = vmatprep.subr.mxu0 0.0
        %2176 = vmatpush1.msra.mxu0 %v2140
        %2177 = vmatprep.subr.mxu0 0.0
        %2178 = vmatpush1.msra.mxu0 %v2139
        %2179 = vmatprep.subr.mxu0 0.0
        %2180 = vmatpush1.msra.mxu0 %v2138
        %2181 = vmatprep.subr.mxu0 0.0
        %2182 = vmatpush1.msra.mxu0 %v2137
        %2183 = vmatprep.subr.mxu0 0.0
        %2184 = vmatpush1.msra.mxu0 %v2136
        %2185 = vmatprep.subr.mxu0 0.0
        %2186 = vmatpush1.msra.mxu0 %v2135
        %2187 = vmatprep.subr.mxu0 0.0
        %2188 = vmatpush1.msra.mxu0 %v2134
        %2189 = vmatprep.subr.mxu0 0.0
        %2190 = vmatpush2.msra.mxu0 0.0
        %2191 = vmatprep.subr.mxu0 0.0
        %2192 = vmatpush2.msra.mxu0 0.0
        %2193 = vmatprep.subr.mxu0 0.0
        %2194 = vmatpush2.msra.mxu0 0.0
        %2195 = vmatprep.subr.mxu0 0.0
        %2196 = vmatpush2.msra.mxu0 0.0
        %2197 = vmatprep.subr.mxu0 0.0
        %2198 = vmatpush2.msra.mxu0 0.0
        %2199 = vmatprep.subr.mxu0 0.0
        %2200 = vmatpush2.msra.mxu0 0.0
        %2201 = vmatprep.subr.mxu0 0.0
        %2202 = vmatpush2.msra.mxu0 0.0
        %2203 = vmatprep.subr.mxu0 0.0
        %2204 = vmatpush2.msra.mxu0 0.0
        %2205 = vmatprep.subr.mxu0 0.0
        %2206 = vmatpush2.msra.mxu0 0.0
        %2207 = vmatprep.subr.mxu0 0.0
        %2208 = vmatpush2.msra.mxu0 0.0
        %2209 = vmatprep.subr.mxu0 0.0
        %2210 = vmatpush2.msra.mxu0 0.0
        %2211 = vmatprep.subr.mxu0 0.0
        %2212 = vmatpush2.msra.mxu0 0.0
        %2213 = vmatprep.subr.mxu0 0.0
        %2214 = vmatpush2.msra.mxu0 0.0
        %2215 = vmatprep.subr.mxu0 0.0
        %2216 = vmatpush2.msra.mxu0 0.0
        %2217 = vmatprep.subr.mxu0 0.0
        %2218 = vmatpush2.msra.mxu0 0.0
        %2219 = vmatprep.subr.mxu0 0.0
        %2220 = vmatpush2.msra.mxu0 0.0
        %2221 = vmatprep.mubr.f32.mxu0 0.0
        %2222 = vmatmul.mubr.f32.gmra.mxu0 %v2155
        %v2223 = vpop.f32.mrf.mxu0
        %v2224 = vadd.f32 %v2152, %v2223
        %v2225 = vpop.f32.mrf.mxu0
        %2226 = vdwg.mxu0
        %vm2227 = vcmask 8192
        %2228 = vst.msk [vmem:[%s567] sm:$0x1] %vm2227, %v2224
        %s2229 = sand.u32 %s425, 1
        %s2230 = scalar_lea.sflag [#allocation4], %s2229
        %s2231 = sand.u32 %s425, 1
        %s2232 = scalar_lea.vmem [#allocation3], %s2231
        // Predicated region
        $region93: #{tpu_custom_call.1} parent=91 // pred_check
          %p2233 = pneg %p435
        $region94: #{tpu_custom_call.1} parent=91 // pred_check_branch
          %2235 = sbr.rel (%p2233) target = $region96
        $region95: #{tpu_custom_call.1} parent=91 // pred_region
          %s2237 = ssub.s32 16, 16
          %2238 = vsyncadd %s2230, %s2237
          %s2239 = smul.addr %s34, 16
          %s2240 = scalar_lea.hbm %s18, %s2239
          %s2242 = sshll.u32 %s2232, 4
          %s2243 = int_to_ptr.vmem [resolvable:$true] %s2242
          %2245 = dma.vmem_to_hbm [thread:$0]  %s2243, 16, %s2240, %s2230
        $region96: #{tpu_custom_call.1} parent=91 // pred_fallthru
          _
      $region92: #{tpu_custom_call.1} parent=5 // pred_fallthru
        _
      %p2246 = scmp.le.s32.totalorder 2, %s29
      // Predicated region
      $region97: #{tpu_custom_call.1} parent=5 // pred_check
        %p2247 = pneg %p2246
      $region98: #{tpu_custom_call.1} parent=5 // pred_check_branch
        %2249 = sbr.rel (%p2247) target = $region100
      $region99: #{tpu_custom_call.1} parent=5 // pred_region
        %s2250 = ssub.s32 %s29, 2
        // Predicated region
        $region101: #{tpu_custom_call.1} parent=99 // pred_check
          %p2251 = pneg %p441
        $region102: #{tpu_custom_call.1} parent=99 // pred_check_branch
          %2253 = sbr.rel (%p2251) target = $region104
        $region103: #{tpu_custom_call.1} parent=99 // pred_region
          %s2254 = sand.u32 %s426, 1
          %s2255 = scalar_lea.sflag [#allocation4], %s2254
          %s2256 = sand.u32 %s426, 1
          %s2257 = scalar_lea.vmem [#allocation3], %s2256
          %2258 = dma.done %s2255, 16
        $region104: #{tpu_custom_call.1} parent=99 // pred_fallthru
          _
      $region100: #{tpu_custom_call.1} parent=5 // pred_fallthru
        _
    $region6: #{tpu_custom_call.1} parent=1 // loop_footer
      %s33 = sadd.s32 1, %s29
    $region7: #{tpu_custom_call.1} parent=1 // loop_footer_branch
      %28 = sbr.rel target = $region3
    $region8: #{tpu_custom_call.1} parent=1 // loop_exit
      _
    %2259 = vsyncpa [#allocation4], 1
    %s2260 = scalar_lea.sflag [#allocation4], 1
    %2261 = vsyncpa %s2260, 1

</llo_original>
